<compile_context>
chip_gen: v7x
topology: tpu7x:2x2x1
jax: 0.10.0
libtpu: 0.0.40
codegen_flags: <defaults>
</compile_context>

<pallas_src>
import jax
import jax.numpy as jnp
from jax.experimental import pallas as pl
from jax.experimental.pallas import tpu as pltpu

LEAK = 0.1
EPS = 1e-5


def _leaky(x):
    return jnp.where(x > 0, x, LEAK * x)


# ---------------------------------------------------------------------------
# Fused Pallas kernel: whole BasicBlock forward for one image per grid step.
# ---------------------------------------------------------------------------
def basic_block_kernel(x_ref, s1_ref, b1_ref, b2_ref,
                       band1_ref, band2_ref, ws_ref, shift_ref, o_ref):
    # x_ref:     (H, W*Cin)        input slab for one image
    # s1/b1:     (1, W*Cin)        BN1 scale/shift (per-channel, tiled over w)
    # b2:        (1, W*Cout)       BN2 shift (scale pre-folded into band1)
    # band1:     (3, W*Cin, W*Cout) banded conv1 weights (one band per kernel row)
    # band2:     (3, W*Cout, W*Cout) banded conv2 weights
    # ws:        (W*Cin, W*Cout)   block-diagonal 1x1 shortcut weights
    # shift:     (2, H, H)         row-shift matrices (dy = -1 and dy = +1)
    # o_ref:     (H, W*Cout)       output slab (lane-dense, W*Cout == 128 here)
    f32 = jnp.float32

    x = x_ref[...]
    x1 = _leaky(x * s1_ref[...] + b1_ref[...])            # (H, W*Cin)

    s_m1 = shift_ref[0]                                    # V[h] = X[h-1]
    s_p1 = shift_ref[1]                                    # V[h] = X[h+1]

    def conv3x3(v, band_ref):
        # out[h] = sum_dy (S_dy @ v)[h] @ B_dy  ==  sum_dy S_dy @ (v @ B_dy)
        p_m1 = jnp.dot(v, band_ref[0], preferred_element_type=f32)
        p_0 = jnp.dot(v, band_ref[1], preferred_element_type=f32)
        p_p1 = jnp.dot(v, band_ref[2], preferred_element_type=f32)
        return (p_0
                + jnp.dot(s_m1, p_m1, preferred_element_type=f32)
                + jnp.dot(s_p1, p_p1, preferred_element_type=f32))

    # h = LeakyReLU(BN2(conv1(x1)))   (BN2 scale folded into band1 host-side)
    h = _leaky(conv3x3(x1, band1_ref) + b2_ref[...])       # (H, W*Cout)

    # out = convShortcut(x1) + conv2(h)   (shortcut seeds the accumulator)
    out = jnp.dot(x1, ws_ref[...], preferred_element_type=f32)
    out = out + conv3x3(h, band2_ref)
    o_ref[...] = out


# ---------------------------------------------------------------------------
# Host-side weight rearrangement (pure layout; done once per call under jit)
# ---------------------------------------------------------------------------
def _fold_bn(gamma, beta, mean, var):
    s = gamma / jnp.sqrt(var + EPS)
    b = beta - mean * s
    return s, b


def _conv3x3_bands(k_oihw, W):
    """(Cout, Cin, 3, 3) -> (3, W*Cin, W*Cout) banded matrices, one per kernel row.

    bands[ky][(w')*Cin + ci, w*Cout + co] = K[co, ci, ky, kx]  where w' = w + kx - 1.
    Out-of-range column offsets (the zero-padding) simply have no block.
    """
    kf = k_oihw.astype(jnp.float32)
    eyes = [jnp.eye(W, k=-dx, dtype=jnp.float32) for dx in (-1, 0, 1)]
    bands = []
    for ky in range(3):
        acc = jnp.zeros((W * kf.shape[1], W * kf.shape[0]), jnp.float32)
        for kx in range(3):
            acc = acc + jnp.kron(eyes[kx], kf[:, :, ky, kx].T)
        bands.append(acc)
    return jnp.stack(bands, axis=0)


def basic_block_forward(x_nchw, params):
    N, Cin, H, W = x_nchw.shape
    Cout = params["conv1_w"].shape[0]

    # NCHW -> NHWC -> lane-dense slab (N*H, W*Cin)
    x = jnp.transpose(x_nchw, (0, 2, 3, 1)).astype(jnp.float32)
    x2d = x.reshape(N * H, W * Cin)

    s1, b1 = _fold_bn(params["bn1_gamma"], params["bn1_beta"],
                      params["bn1_mean"], params["bn1_var"])
    s2, b2 = _fold_bn(params["bn2_gamma"], params["bn2_beta"],
                      params["bn2_mean"], params["bn2_var"])

    s1s = jnp.tile(s1, W).reshape(1, W * Cin)
    b1s = jnp.tile(b1, W).reshape(1, W * Cin)
    s2_row = jnp.tile(s2, W)                                # (W*Cout,)
    b2s = jnp.tile(b2, W).reshape(1, W * Cout)

    band1 = _conv3x3_bands(params["conv1_w"], W) * s2_row[None, None, :]  # fold BN2 scale
    band2 = _conv3x3_bands(params["conv2_w"], W)
    ws_bd = jnp.kron(jnp.eye(W, dtype=jnp.float32),
                     params["convs_w"][:, :, 0, 0].astype(jnp.float32).T)  # (W*Cin, W*Cout)

    # Row-shift matrices: (S @ X)[h] = X[h + dy] with zero rows at the border.
    shift = jnp.stack([jnp.eye(H, k=-1, dtype=jnp.float32),
                       jnp.eye(H, k=1, dtype=jnp.float32)], axis=0)        # (2, H, H)

    out2d = pl.pallas_call(
        basic_block_kernel,
        out_shape=jax.ShapeDtypeStruct((N * H, W * Cout), jnp.float32),
        grid=(N,),
        in_specs=[
            pl.BlockSpec((H, W * Cin), lambda n: (n, 0)),          # x slab (per image)
            pl.BlockSpec((1, W * Cin), lambda n: (0, 0)),          # s1
            pl.BlockSpec((1, W * Cin), lambda n: (0, 0)),          # b1
            pl.BlockSpec((1, W * Cout), lambda n: (0, 0)),         # b2
            pl.BlockSpec((3, W * Cin, W * Cout), lambda n: (0, 0, 0)),   # band1
            pl.BlockSpec((3, W * Cout, W * Cout), lambda n: (0, 0, 0)),  # band2
            pl.BlockSpec((W * Cin, W * Cout), lambda n: (0, 0)),   # shortcut
            pl.BlockSpec((2, H, H), lambda n: (0, 0, 0)),          # row shifts
        ],
        out_specs=pl.BlockSpec((H, W * Cout), lambda n: (n, 0)),
        compiler_params=pltpu.CompilerParams(dimension_semantics=("parallel",)),
    )(x2d, s1s, b1s, b2s, band1, band2, ws_bd, shift)

    out = out2d.reshape(N, H, W, Cout)
    return jnp.transpose(out, (0, 3, 1, 2))                         # back to NCHW


# ---------------------------------------------------------------------------
# Pure-JAX reference (independent math: real convolutions, NCHW) for checking
# ---------------------------------------------------------------------------
def reference_forward(x_nchw, params):
    x = x_nchw.astype(jnp.float32)
    s1, b1 = _fold_bn(params["bn1_gamma"], params["bn1_beta"],
                      params["bn1_mean"], params["bn1_var"])
    s2, b2 = _fold_bn(params["bn2_gamma"], params["bn2_beta"],
                      params["bn2_mean"], params["bn2_var"])

    def conv(v, w, pad):
        return jax.lax.conv_general_dilated(
            v, w.astype(jnp.float32), window_strides=(1, 1), padding=pad,
            dimension_numbers=("NCHW", "OIHW", "NCHW"),
            precision=jax.lax.Precision.HIGHEST)

    x1 = _leaky(x * s1[None, :, None, None] + b1[None, :, None, None])
    h = _leaky(conv(x1, params["conv1_w"], ((1, 1), (1, 1)))
               * s2[None, :, None, None] + b2[None, :, None, None])
    out = conv(h, params["conv2_w"], ((1, 1), (1, 1))) \
        + conv(x1, params["convs_w"], ((0, 0), (0, 0)))
    return out


# ---------------------------------------------------------------------------
# Deterministic parameter initialization (shapes per BasicBlock.__init__)
# ---------------------------------------------------------------------------
def init_params(key, cin, cout):
    ks = jax.random.split(key, 12)

    def conv_w(k, co, ci, kh, kw):
        bound = 1.0 / jnp.sqrt(ci * kh * kw)
        return jax.random.uniform(k, (co, ci, kh, kw), jnp.float32, -bound, bound)

    return dict(
        bn1_gamma=jax.random.uniform(ks[0], (cin,), jnp.float32, 0.5, 1.5),
        bn1_beta=0.1 * jax.random.normal(ks[1], (cin,), jnp.float32),
        bn1_mean=0.1 * jax.random.normal(ks[2], (cin,), jnp.float32),
        bn1_var=jax.random.uniform(ks[3], (cin,), jnp.float32, 0.5, 1.5),
        conv1_w=conv_w(ks[4], cout, cin, 3, 3),
        bn2_gamma=jax.random.uniform(ks[5], (cout,), jnp.float32, 0.5, 1.5),
        bn2_beta=0.1 * jax.random.normal(ks[6], (cout,), jnp.float32),
        bn2_mean=0.1 * jax.random.normal(ks[7], (cout,), jnp.float32),
        bn2_var=jax.random.uniform(ks[8], (cout,), jnp.float32, 0.5, 1.5),
        conv2_w=conv_w(ks[9], cout, cout, 3, 3),
        convs_w=conv_w(ks[10], cout, cin, 1, 1),
    )


if __name__ == "__main__":
    key = jax.random.PRNGKey(0)
    kx, kp = jax.random.split(key)

    N, Cin, H, W, Cout = 2, 4, 16, 16, 8   # in_planes=4, out_planes=8, stride=1
    x = jax.random.normal(kx, (N, Cin, H, W), jnp.float32)
    params = init_params(kp, Cin, Cout)

    out = jax.jit(basic_block_forward)(x, params)
    out = jax.block_until_ready(out)

    assert out.shape == (N, Cout, H, W), out.shape
    ref = reference_forward(x, params)
    max_err = float(jnp.max(jnp.abs(out - ref)))
    if not max_err < 5e-2:
        raise AssertionError(f"kernel vs reference mismatch: {max_err}")

    print("KERNEL_OK")
</pallas_src>

<mosaic_0001>
module attributes {stable_mosaic.version = 11 : i64} {
  func.func @basic_block_kernel(%arg0: i32, %arg1: memref<16x64xf32, #tpu.memory_space<vmem>>, %arg2: memref<1x64xf32, #tpu.memory_space<vmem>>, %arg3: memref<1x64xf32, #tpu.memory_space<vmem>>, %arg4: memref<1x128xf32, #tpu.memory_space<vmem>>, %arg5: memref<3x64x128xf32, #tpu.memory_space<vmem>>, %arg6: memref<3x128x128xf32, #tpu.memory_space<vmem>>, %arg7: memref<64x128xf32, #tpu.memory_space<vmem>>, %arg8: memref<2x16x16xf32, #tpu.memory_space<vmem>>, %arg9: memref<16x128xf32, #tpu.memory_space<vmem>>) attributes {dimension_semantics = [#tpu.dimension_semantics<parallel>], iteration_bounds = array<i64: 2>, scalar_prefetch = 0 : i64, scratch_operands = 0 : i64, tpu.core_type = #tpu.core_type<tc>, window_params = [{transform_indices = @transform_0, window_bounds = array<i64: 16, 64>}, {pipeline_mode = #tpu.pipeline_mode<synchronous>, transform_indices = @transform_1, window_bounds = array<i64: 1, 64>}, {pipeline_mode = #tpu.pipeline_mode<synchronous>, transform_indices = @transform_2, window_bounds = array<i64: 1, 64>}, {pipeline_mode = #tpu.pipeline_mode<synchronous>, transform_indices = @transform_3, window_bounds = array<i64: 1, 128>}, {pipeline_mode = #tpu.pipeline_mode<synchronous>, transform_indices = @transform_4, window_bounds = array<i64: 3, 64, 128>}, {pipeline_mode = #tpu.pipeline_mode<synchronous>, transform_indices = @transform_5, window_bounds = array<i64: 3, 128, 128>}, {pipeline_mode = #tpu.pipeline_mode<synchronous>, transform_indices = @transform_6, window_bounds = array<i64: 64, 128>}, {pipeline_mode = #tpu.pipeline_mode<synchronous>, transform_indices = @transform_7, window_bounds = array<i64: 2, 16, 16>}, {transform_indices = @transform_8, window_bounds = array<i64: 16, 128>}]} {
    %c0 = arith.constant 0 : index
    %c0_0 = arith.constant 0 : index
    %0 = vector.load %arg1[%c0, %c0_0] : memref<16x64xf32, #tpu.memory_space<vmem>>, vector<16x64xf32>
    %c0_1 = arith.constant 0 : index
    %c0_2 = arith.constant 0 : index
    %1 = vector.load %arg2[%c0_1, %c0_2] : memref<1x64xf32, #tpu.memory_space<vmem>>, vector<1x64xf32>
    %2 = vector.broadcast %1 : vector<1x64xf32> to vector<16x64xf32>
    %3 = arith.mulf %0, %2 : vector<16x64xf32>
    %c0_3 = arith.constant 0 : index
    %c0_4 = arith.constant 0 : index
    %4 = vector.load %arg3[%c0_3, %c0_4] : memref<1x64xf32, #tpu.memory_space<vmem>>, vector<1x64xf32>
    %5 = vector.broadcast %4 : vector<1x64xf32> to vector<16x64xf32>
    %6 = arith.addf %3, %5 : vector<16x64xf32>
    %cst = arith.constant 0.000000e+00 : f32
    %7 = vector.broadcast %cst : f32 to vector<16x64xf32>
    %8 = arith.cmpf ogt, %6, %7 : vector<16x64xf32>
    %cst_5 = arith.constant 1.000000e-01 : f32
    %9 = vector.broadcast %cst_5 : f32 to vector<16x64xf32>
    %10 = arith.mulf %9, %6 : vector<16x64xf32>
    %11 = arith.select %8, %6, %10 : vector<16x64xi1>, vector<16x64xf32>
    %c0_6 = arith.constant 0 : index
    %c0_7 = arith.constant 0 : index
    %c0_8 = arith.constant 0 : index
    %12 = vector.load %arg8[%c0_6, %c0_7, %c0_8] : memref<2x16x16xf32, #tpu.memory_space<vmem>>, vector<1x16x16xf32>
    %13 = vector.shape_cast %12 : vector<1x16x16xf32> to vector<16x16xf32>
    %c1 = arith.constant 1 : index
    %c0_9 = arith.constant 0 : index
    %c0_10 = arith.constant 0 : index
    %14 = vector.load %arg8[%c1, %c0_9, %c0_10] : memref<2x16x16xf32, #tpu.memory_space<vmem>>, vector<1x16x16xf32>
    %15 = vector.shape_cast %14 : vector<1x16x16xf32> to vector<16x16xf32>
    %c0_11 = arith.constant 0 : index
    %c0_12 = arith.constant 0 : index
    %c0_13 = arith.constant 0 : index
    %16 = vector.load %arg5[%c0_11, %c0_12, %c0_13] : memref<3x64x128xf32, #tpu.memory_space<vmem>>, vector<1x64x128xf32>
    %17 = vector.shape_cast %16 : vector<1x64x128xf32> to vector<64x128xf32>
    %cst_14 = arith.constant dense<0.000000e+00> : vector<16x128xf32>
    %18 = tpu.matmul %11, %17, %cst_14 {dimension_numbers = #tpu.dot_dimension_numbers<[1], [0], [0], [1], [0, 0, 1, 1], [], []>} : vector<16x64xf32>, vector<64x128xf32>, vector<16x128xf32> -> vector<16x128xf32>
    %c1_15 = arith.constant 1 : index
    %c0_16 = arith.constant 0 : index
    %c0_17 = arith.constant 0 : index
    %19 = vector.load %arg5[%c1_15, %c0_16, %c0_17] : memref<3x64x128xf32, #tpu.memory_space<vmem>>, vector<1x64x128xf32>
    %20 = vector.shape_cast %19 : vector<1x64x128xf32> to vector<64x128xf32>
    %cst_18 = arith.constant dense<0.000000e+00> : vector<16x128xf32>
    %21 = tpu.matmul %11, %20, %cst_18 {dimension_numbers = #tpu.dot_dimension_numbers<[1], [0], [0], [1], [0, 0, 1, 1], [], []>} : vector<16x64xf32>, vector<64x128xf32>, vector<16x128xf32> -> vector<16x128xf32>
    %c2 = arith.constant 2 : index
    %c0_19 = arith.constant 0 : index
    %c0_20 = arith.constant 0 : index
    %22 = vector.load %arg5[%c2, %c0_19, %c0_20] : memref<3x64x128xf32, #tpu.memory_space<vmem>>, vector<1x64x128xf32>
    %23 = vector.shape_cast %22 : vector<1x64x128xf32> to vector<64x128xf32>
    %cst_21 = arith.constant dense<0.000000e+00> : vector<16x128xf32>
    %24 = tpu.matmul %11, %23, %cst_21 {dimension_numbers = #tpu.dot_dimension_numbers<[1], [0], [0], [1], [0, 0, 1, 1], [], []>} : vector<16x64xf32>, vector<64x128xf32>, vector<16x128xf32> -> vector<16x128xf32>
    %cst_22 = arith.constant dense<0.000000e+00> : vector<16x128xf32>
    %25 = tpu.matmul %13, %18, %cst_22 {dimension_numbers = #tpu.dot_dimension_numbers<[1], [0], [0], [1], [0, 0, 1, 1], [], []>} : vector<16x16xf32>, vector<16x128xf32>, vector<16x128xf32> -> vector<16x128xf32>
    %26 = arith.addf %21, %25 : vector<16x128xf32>
    %cst_23 = arith.constant dense<0.000000e+00> : vector<16x128xf32>
    %27 = tpu.matmul %15, %24, %cst_23 {dimension_numbers = #tpu.dot_dimension_numbers<[1], [0], [0], [1], [0, 0, 1, 1], [], []>} : vector<16x16xf32>, vector<16x128xf32>, vector<16x128xf32> -> vector<16x128xf32>
    %28 = arith.addf %26, %27 : vector<16x128xf32>
    %c0_24 = arith.constant 0 : index
    %c0_25 = arith.constant 0 : index
    %29 = vector.load %arg4[%c0_24, %c0_25] : memref<1x128xf32, #tpu.memory_space<vmem>>, vector<1x128xf32>
    %30 = vector.broadcast %29 : vector<1x128xf32> to vector<16x128xf32>
    %31 = arith.addf %28, %30 : vector<16x128xf32>
    %cst_26 = arith.constant 0.000000e+00 : f32
    %32 = vector.broadcast %cst_26 : f32 to vector<16x128xf32>
    %33 = arith.cmpf ogt, %31, %32 : vector<16x128xf32>
    %cst_27 = arith.constant 1.000000e-01 : f32
    %34 = vector.broadcast %cst_27 : f32 to vector<16x128xf32>
    %35 = arith.mulf %34, %31 : vector<16x128xf32>
    %36 = arith.select %33, %31, %35 : vector<16x128xi1>, vector<16x128xf32>
    %c0_28 = arith.constant 0 : index
    %c0_29 = arith.constant 0 : index
    %37 = vector.load %arg7[%c0_28, %c0_29] : memref<64x128xf32, #tpu.memory_space<vmem>>, vector<64x128xf32>
    %cst_30 = arith.constant dense<0.000000e+00> : vector<16x128xf32>
    %38 = tpu.matmul %11, %37, %cst_30 {dimension_numbers = #tpu.dot_dimension_numbers<[1], [0], [0], [1], [0, 0, 1, 1], [], []>} : vector<16x64xf32>, vector<64x128xf32>, vector<16x128xf32> -> vector<16x128xf32>
    %c0_31 = arith.constant 0 : index
    %c0_32 = arith.constant 0 : index
    %c0_33 = arith.constant 0 : index
    %39 = vector.load %arg6[%c0_31, %c0_32, %c0_33] : memref<3x128x128xf32, #tpu.memory_space<vmem>>, vector<1x128x128xf32>
    %40 = vector.shape_cast %39 : vector<1x128x128xf32> to vector<128x128xf32>
    %cst_34 = arith.constant dense<0.000000e+00> : vector<16x128xf32>
    %41 = tpu.matmul %36, %40, %cst_34 {dimension_numbers = #tpu.dot_dimension_numbers<[1], [0], [0], [1], [0, 0, 1, 1], [], []>} : vector<16x128xf32>, vector<128x128xf32>, vector<16x128xf32> -> vector<16x128xf32>
    %c1_35 = arith.constant 1 : index
    %c0_36 = arith.constant 0 : index
    %c0_37 = arith.constant 0 : index
    %42 = vector.load %arg6[%c1_35, %c0_36, %c0_37] : memref<3x128x128xf32, #tpu.memory_space<vmem>>, vector<1x128x128xf32>
    %43 = vector.shape_cast %42 : vector<1x128x128xf32> to vector<128x128xf32>
    %cst_38 = arith.constant dense<0.000000e+00> : vector<16x128xf32>
    %44 = tpu.matmul %36, %43, %cst_38 {dimension_numbers = #tpu.dot_dimension_numbers<[1], [0], [0], [1], [0, 0, 1, 1], [], []>} : vector<16x128xf32>, vector<128x128xf32>, vector<16x128xf32> -> vector<16x128xf32>
    %c2_39 = arith.constant 2 : index
    %c0_40 = arith.constant 0 : index
    %c0_41 = arith.constant 0 : index
    %45 = vector.load %arg6[%c2_39, %c0_40, %c0_41] : memref<3x128x128xf32, #tpu.memory_space<vmem>>, vector<1x128x128xf32>
    %46 = vector.shape_cast %45 : vector<1x128x128xf32> to vector<128x128xf32>
    %cst_42 = arith.constant dense<0.000000e+00> : vector<16x128xf32>
    %47 = tpu.matmul %36, %46, %cst_42 {dimension_numbers = #tpu.dot_dimension_numbers<[1], [0], [0], [1], [0, 0, 1, 1], [], []>} : vector<16x128xf32>, vector<128x128xf32>, vector<16x128xf32> -> vector<16x128xf32>
    %cst_43 = arith.constant dense<0.000000e+00> : vector<16x128xf32>
    %48 = tpu.matmul %13, %41, %cst_43 {dimension_numbers = #tpu.dot_dimension_numbers<[1], [0], [0], [1], [0, 0, 1, 1], [], []>} : vector<16x16xf32>, vector<16x128xf32>, vector<16x128xf32> -> vector<16x128xf32>
    %49 = arith.addf %44, %48 : vector<16x128xf32>
    %cst_44 = arith.constant dense<0.000000e+00> : vector<16x128xf32>
    %50 = tpu.matmul %15, %47, %cst_44 {dimension_numbers = #tpu.dot_dimension_numbers<[1], [0], [0], [1], [0, 0, 1, 1], [], []>} : vector<16x16xf32>, vector<16x128xf32>, vector<16x128xf32> -> vector<16x128xf32>
    %51 = arith.addf %49, %50 : vector<16x128xf32>
    %52 = arith.addf %38, %51 : vector<16x128xf32>
    %c0_45 = arith.constant 0 : index
    %c0_46 = arith.constant 0 : index
    %53 = vector.load %arg9[%c0_45, %c0_46] : memref<16x128xf32, #tpu.memory_space<vmem>>, vector<16x128xf32>
    tpu.vector_store %arg9[%c0_45, %c0_46], %52 {strides = array<i32>} : memref<16x128xf32, #tpu.memory_space<vmem>>, vector<16x128xf32>,
    return
  }
  func.func @transform_0(%arg0: i32) -> (i32, i32) {
    %c0_i32 = arith.constant 0 : i32
    %c0_i32_0 = arith.constant 0 : i32
    return %arg0, %c0_i32 : i32, i32
  }
  func.func @transform_1(%arg0: i32) -> (i32, i32) {
    %c0_i32 = arith.constant 0 : i32
    %c0_i32_0 = arith.constant 0 : i32
    %c0_i32_1 = arith.constant 0 : i32
    return %c0_i32, %c0_i32_0 : i32, i32
  }
  func.func @transform_2(%arg0: i32) -> (i32, i32) {
    %c0_i32 = arith.constant 0 : i32
    %c0_i32_0 = arith.constant 0 : i32
    %c0_i32_1 = arith.constant 0 : i32
    return %c0_i32, %c0_i32_0 : i32, i32
  }
  func.func @transform_3(%arg0: i32) -> (i32, i32) {
    %c0_i32 = arith.constant 0 : i32
    %c0_i32_0 = arith.constant 0 : i32
    %c0_i32_1 = arith.constant 0 : i32
    return %c0_i32, %c0_i32_0 : i32, i32
  }
  func.func @transform_4(%arg0: i32) -> (i32, i32, i32) {
    %c0_i32 = arith.constant 0 : i32
    %c0_i32_0 = arith.constant 0 : i32
    %c0_i32_1 = arith.constant 0 : i32
    %c0_i32_2 = arith.constant 0 : i32
    return %c0_i32, %c0_i32_0, %c0_i32_1 : i32, i32, i32
  }
  func.func @transform_5(%arg0: i32) -> (i32, i32, i32) {
    %c0_i32 = arith.constant 0 : i32
    %c0_i32_0 = arith.constant 0 : i32
    %c0_i32_1 = arith.constant 0 : i32
    %c0_i32_2 = arith.constant 0 : i32
    return %c0_i32, %c0_i32_0, %c0_i32_1 : i32, i32, i32
  }
  func.func @transform_6(%arg0: i32) -> (i32, i32) {
    %c0_i32 = arith.constant 0 : i32
    %c0_i32_0 = arith.constant 0 : i32
    %c0_i32_1 = arith.constant 0 : i32
    return %c0_i32, %c0_i32_0 : i32, i32
  }
  func.func @transform_7(%arg0: i32) -> (i32, i32, i32) {
    %c0_i32 = arith.constant 0 : i32
    %c0_i32_0 = arith.constant 0 : i32
    %c0_i32_1 = arith.constant 0 : i32
    %c0_i32_2 = arith.constant 0 : i32
    return %c0_i32, %c0_i32_0, %c0_i32_1 : i32, i32, i32
  }
  func.func @transform_8(%arg0: i32) -> (i32, i32) {
    %c0_i32 = arith.constant 0 : i32
    %c0_i32_0 = arith.constant 0 : i32
    return %arg0, %c0_i32 : i32, i32
  }
}

</mosaic_0001>

<llo_original>
// kernel: tile.33
$region0: #{tile.33}
  #allocation0 [shape = 's32[1]{0}', space=sflag, size = 0x4, scoped, tag = 'scoped memory for tile.33']
  %s0 = inlined_call_operand.vmem [shape: f32[8], index: 0, kind: input, shape index: {}]
  %s1 = inlined_call_operand.vmem [shape: f32[16,8], index: 1, kind: output, shape index: {}]
  // Predicated region
  $region2: #{tile.33} parent=0 // pred_check
    _
  $region3: #{tile.33} parent=0 // pred_check_branch
    %3 = sbr.rel (0) target = $region5
  $region4: #{tile.33} parent=0 // pred_region
    _
  $region5: #{tile.33} parent=0 // pred_fallthru
    _
  %v4 = vld [vmem:[%s0] ss:$0 sm:$0xff]
  %5 = vst [vmem:[%s1] sm:$0xff] %v4
  %s6 = scalar_lea.vmem %s1, 8
  %7 = vst [vmem:[%s6] sm:$0xff] %v4

// kernel: mul.37
$region0: #{mul.37}
  %s0 = inlined_call_operand.vmem [shape: f32[16,8], index: 0, kind: input, shape index: {}]
  %s1 = inlined_call_operand.vmem [shape: f32[128], index: 1, kind: output, shape index: {}]
  $region1: #{mul.37} parent=0
    #allocation0 [shape = 'u8[4096]{0}', space=vmem, size = 0x1000, scoped, tag = 'scoped mem for output reshape']
    %v2 = vld [vmem:[%s0] sm:$0x1]
    %vm3 = vcmask 64512
    %4 = vst.msk [vmem:[#allocation0] sm:$0x1] %vm3, %v2
    %s5 = scalar_lea.vmem %s0, 15
    %v6 = vld [vmem:[%s5] sm:$0x1]
    %7 = vrot.lane.b32.xlu0 %v6, 120
    %v8 = vpop.permute.xlu0 %7
    %vm9 = vcmask 1048512
    %10 = vst.msk [vmem:[#allocation0] sm:$0x1] %vm9, %v8
    %s11 = scalar_lea.vmem %s0, 14
    %v12 = vld [vmem:[%s11] sm:$0x1]
    %13 = vrot.lane.b32.xlu0 %v12, 112
    %v14 = vpop.permute.xlu0 %13
    %vm15 = vcmask 982912
    %16 = vst.msk [vmem:[#allocation0] sm:$0x1] %vm15, %v14
    %s17 = scalar_lea.vmem %s0, 13
    %v18 = vld [vmem:[%s17] sm:$0x1]
    %19 = vrot.lane.b32.xlu0 %v18, 104
    %v20 = vpop.permute.xlu0 %19
    %vm21 = vcmask 917312
    %22 = vst.msk [vmem:[#allocation0] sm:$0x1] %vm21, %v20
    %s23 = scalar_lea.vmem %s0, 12
    %v24 = vld [vmem:[%s23] sm:$0x1]
    %25 = vrot.lane.b32.xlu0 %v24, 96
    %v26 = vpop.permute.xlu0 %25
    %vm27 = vcmask 851712
    %28 = vst.msk [vmem:[#allocation0] sm:$0x1] %vm27, %v26
    %s29 = scalar_lea.vmem %s0, 11
    %v30 = vld [vmem:[%s29] sm:$0x1]
    %31 = vrot.lane.b32.xlu0 %v30, 88
    %v32 = vpop.permute.xlu0 %31
    %vm33 = vcmask 786112
    %34 = vst.msk [vmem:[#allocation0] sm:$0x1] %vm33, %v32
    %s35 = scalar_lea.vmem %s0, 10
    %v36 = vld [vmem:[%s35] sm:$0x1]
    %37 = vrot.lane.b32.xlu0 %v36, 80
    %v38 = vpop.permute.xlu0 %37
    %vm39 = vcmask 720512
    %40 = vst.msk [vmem:[#allocation0] sm:$0x1] %vm39, %v38
    %s41 = scalar_lea.vmem %s0, 9
    %v42 = vld [vmem:[%s41] sm:$0x1]
    %43 = vrot.lane.b32.xlu0 %v42, 72
    %v44 = vpop.permute.xlu0 %43
    %vm45 = vcmask 654912
    %46 = vst.msk [vmem:[#allocation0] sm:$0x1] %vm45, %v44
    %s47 = scalar_lea.vmem %s0, 8
    %v48 = vld [vmem:[%s47] sm:$0x1]
    %49 = vrot.lane.b32.xlu0 %v48, 64
    %v50 = vpop.permute.xlu0 %49
    %vm51 = vcmask 589312
    %52 = vst.msk [vmem:[#allocation0] sm:$0x1] %vm51, %v50
    %s53 = scalar_lea.vmem %s0, 7
    %v54 = vld [vmem:[%s53] sm:$0x1]
    %55 = vrot.lane.b32.xlu0 %v54, 56
    %v56 = vpop.permute.xlu0 %55
    %vm57 = vcmask 523712
    %58 = vst.msk [vmem:[#allocation0] sm:$0x1] %vm57, %v56
    %s59 = scalar_lea.vmem %s0, 6
    %v60 = vld [vmem:[%s59] sm:$0x1]
    %61 = vrot.lane.b32.xlu0 %v60, 48
    %v62 = vpop.permute.xlu0 %61
    %vm63 = vcmask 458112
    %64 = vst.msk [vmem:[#allocation0] sm:$0x1] %vm63, %v62
    %s65 = scalar_lea.vmem %s0, 5
    %v66 = vld [vmem:[%s65] sm:$0x1]
    %67 = vrot.lane.b32.xlu0 %v66, 40
    %v68 = vpop.permute.xlu0 %67
    %vm69 = vcmask 392512
    %70 = vst.msk [vmem:[#allocation0] sm:$0x1] %vm69, %v68
    %s71 = scalar_lea.vmem %s0, 4
    %v72 = vld [vmem:[%s71] sm:$0x1]
    %73 = vrot.lane.b32.xlu0 %v72, 32
    %v74 = vpop.permute.xlu0 %73
    %vm75 = vcmask 326912
    %76 = vst.msk [vmem:[#allocation0] sm:$0x1] %vm75, %v74
    %s77 = scalar_lea.vmem %s0, 3
    %v78 = vld [vmem:[%s77] sm:$0x1]
    %79 = vrot.lane.b32.xlu0 %v78, 24
    %v80 = vpop.permute.xlu0 %79
    %vm81 = vcmask 261312
    %82 = vst.msk [vmem:[#allocation0] sm:$0x1] %vm81, %v80
    %s83 = scalar_lea.vmem %s0, 2
    %v84 = vld [vmem:[%s83] sm:$0x1]
    %85 = vrot.lane.b32.xlu0 %v84, 16
    %v86 = vpop.permute.xlu0 %85
    %vm87 = vcmask 195712
    %88 = vst.msk [vmem:[#allocation0] sm:$0x1] %vm87, %v86
    %s89 = scalar_lea.vmem %s0, 1
    %v90 = vld [vmem:[%s89] sm:$0x1]
    %91 = vrot.lane.b32.xlu0 %v90, 8
    %v92 = vpop.permute.xlu0 %91
    %vm93 = vcmask 130112
    %94 = vst.msk [vmem:[#allocation0] sm:$0x1] %vm93, %v92
    %s96 = sshllo.u32 0, 1
    %v98 = vld [vmem:[#allocation0] sm:%s96]
    %s99 = sshllo.u32 0, 1
    %100 = vst [vmem:[%s1] sm:%s99] %v98

// kernel: tile.23
$region0: #{tile.23}
  #allocation0 [shape = 's32[1]{0}', space=sflag, size = 0x4, scoped, tag = 'scoped memory for tile.23']
  %s0 = inlined_call_operand.vmem [shape: f32[4], index: 0, kind: input, shape index: {}]
  %s1 = inlined_call_operand.vmem [shape: f32[16,4], index: 1, kind: output, shape index: {}]
  // Predicated region
  $region2: #{tile.23} parent=0 // pred_check
    _
  $region3: #{tile.23} parent=0 // pred_check_branch
    %3 = sbr.rel (0) target = $region5
  $region4: #{tile.23} parent=0 // pred_region
    _
  $region5: #{tile.23} parent=0 // pred_fallthru
    _
  %v4 = vld [vmem:[%s0] ss:$0 sm:$0xff]
  %5 = vst [vmem:[%s1] sm:$0xff] %v4
  %s6 = scalar_lea.vmem %s1, 8
  %7 = vst [vmem:[%s6] sm:$0xff] %v4

// kernel: tile.24
$region0: #{tile.24}
  %s0 = inlined_call_operand.vmem [shape: f32[16,4], index: 0, kind: input, shape index: {}]
  %s1 = inlined_call_operand.vmem [shape: f32[1,64], index: 1, kind: output, shape index: {}]
  $region1: #{tile.24} parent=0
    #allocation0 [shape = 'u8[4096]{0}', space=vmem, size = 0x1000, scoped, tag = 'scoped mem for output reshape']
    %v2 = vld [vmem:[%s0] sm:$0x1]
    %vm3 = vcmask 31744
    %4 = vst.msk [vmem:[#allocation0] sm:$0x1] %vm3, %v2
    %s5 = scalar_lea.vmem %s0, 15
    %v6 = vld [vmem:[%s5] sm:$0x1]
    %7 = vrot.lane.b32.xlu0 %v6, 60
    %v8 = vpop.permute.xlu0 %7
    %vm9 = vcmask 523744
    %10 = vst.msk [vmem:[#allocation0] sm:$0x1] %vm9, %v8
    %s11 = scalar_lea.vmem %s0, 14
    %v12 = vld [vmem:[%s11] sm:$0x1]
    %13 = vrot.lane.b32.xlu0 %v12, 56
    %v14 = vpop.permute.xlu0 %13
    %vm15 = vcmask 490944
    %16 = vst.msk [vmem:[#allocation0] sm:$0x1] %vm15, %v14
    %s17 = scalar_lea.vmem %s0, 13
    %v18 = vld [vmem:[%s17] sm:$0x1]
    %19 = vrot.lane.b32.xlu0 %v18, 52
    %v20 = vpop.permute.xlu0 %19
    %vm21 = vcmask 458144
    %22 = vst.msk [vmem:[#allocation0] sm:$0x1] %vm21, %v20
    %s23 = scalar_lea.vmem %s0, 12
    %v24 = vld [vmem:[%s23] sm:$0x1]
    %25 = vrot.lane.b32.xlu0 %v24, 48
    %v26 = vpop.permute.xlu0 %25
    %vm27 = vcmask 425344
    %28 = vst.msk [vmem:[#allocation0] sm:$0x1] %vm27, %v26
    %s29 = scalar_lea.vmem %s0, 11
    %v30 = vld [vmem:[%s29] sm:$0x1]
    %31 = vrot.lane.b32.xlu0 %v30, 44
    %v32 = vpop.permute.xlu0 %31
    %vm33 = vcmask 392544
    %34 = vst.msk [vmem:[#allocation0] sm:$0x1] %vm33, %v32
    %s35 = scalar_lea.vmem %s0, 10
    %v36 = vld [vmem:[%s35] sm:$0x1]
    %37 = vrot.lane.b32.xlu0 %v36, 40
    %v38 = vpop.permute.xlu0 %37
    %vm39 = vcmask 359744
    %40 = vst.msk [vmem:[#allocation0] sm:$0x1] %vm39, %v38
    %s41 = scalar_lea.vmem %s0, 9
    %v42 = vld [vmem:[%s41] sm:$0x1]
    %43 = vrot.lane.b32.xlu0 %v42, 36
    %v44 = vpop.permute.xlu0 %43
    %vm45 = vcmask 326944
    %46 = vst.msk [vmem:[#allocation0] sm:$0x1] %vm45, %v44
    %s47 = scalar_lea.vmem %s0, 8
    %v48 = vld [vmem:[%s47] sm:$0x1]
    %49 = vrot.lane.b32.xlu0 %v48, 32
    %v50 = vpop.permute.xlu0 %49
    %vm51 = vcmask 294144
    %52 = vst.msk [vmem:[#allocation0] sm:$0x1] %vm51, %v50
    %s53 = scalar_lea.vmem %s0, 7
    %v54 = vld [vmem:[%s53] sm:$0x1]
    %55 = vrot.lane.b32.xlu0 %v54, 28
    %v56 = vpop.permute.xlu0 %55
    %vm57 = vcmask 261344
    %58 = vst.msk [vmem:[#allocation0] sm:$0x1] %vm57, %v56
    %s59 = scalar_lea.vmem %s0, 6
    %v60 = vld [vmem:[%s59] sm:$0x1]
    %61 = vrot.lane.b32.xlu0 %v60, 24
    %v62 = vpop.permute.xlu0 %61
    %vm63 = vcmask 228544
    %64 = vst.msk [vmem:[#allocation0] sm:$0x1] %vm63, %v62
    %s65 = scalar_lea.vmem %s0, 5
    %v66 = vld [vmem:[%s65] sm:$0x1]
    %67 = vrot.lane.b32.xlu0 %v66, 20
    %v68 = vpop.permute.xlu0 %67
    %vm69 = vcmask 195744
    %70 = vst.msk [vmem:[#allocation0] sm:$0x1] %vm69, %v68
    %s71 = scalar_lea.vmem %s0, 4
    %v72 = vld [vmem:[%s71] sm:$0x1]
    %73 = vrot.lane.b32.xlu0 %v72, 16
    %v74 = vpop.permute.xlu0 %73
    %vm75 = vcmask 162944
    %76 = vst.msk [vmem:[#allocation0] sm:$0x1] %vm75, %v74
    %s77 = scalar_lea.vmem %s0, 3
    %v78 = vld [vmem:[%s77] sm:$0x1]
    %79 = vrot.lane.b32.xlu0 %v78, 12
    %v80 = vpop.permute.xlu0 %79
    %vm81 = vcmask 130144
    %82 = vst.msk [vmem:[#allocation0] sm:$0x1] %vm81, %v80
    %s83 = scalar_lea.vmem %s0, 2
    %v84 = vld [vmem:[%s83] sm:$0x1]
    %85 = vrot.lane.b32.xlu0 %v84, 8
    %v86 = vpop.permute.xlu0 %85
    %vm87 = vcmask 97344
    %88 = vst.msk [vmem:[#allocation0] sm:$0x1] %vm87, %v86
    %s89 = scalar_lea.vmem %s0, 1
    %v90 = vld [vmem:[%s89] sm:$0x1]
    %91 = vrot.lane.b32.xlu0 %v90, 4
    %v92 = vpop.permute.xlu0 %91
    %vm93 = vcmask 64544
    %94 = vst.msk [vmem:[#allocation0] sm:$0x1] %vm93, %v92
    %s96 = sshllo.u32 0, 1
    %v98 = vld [vmem:[#allocation0] sm:%s96]
    %s99 = sshllo.u32 0, 1
    %100 = vst [vmem:[%s1] sm:%s99] %v98

// kernel: tile.38
$region0: #{tile.38}
  %s0 = inlined_call_operand.vmem [shape: f32[16,8], index: 0, kind: input, shape index: {}]
  %s1 = inlined_call_operand.vmem [shape: f32[1,128], index: 1, kind: output, shape index: {}]
  $region1: #{tile.38} parent=0
    #allocation0 [shape = 'u8[4096]{0}', space=vmem, size = 0x1000, scoped, tag = 'scoped mem for output reshape']
    %v2 = vld [vmem:[%s0] sm:$0x1]
    %vm3 = vcmask 64512
    %4 = vst.msk [vmem:[#allocation0] sm:$0x1] %vm3, %v2
    %s5 = scalar_lea.vmem %s0, 15
    %v6 = vld [vmem:[%s5] sm:$0x1]
    %7 = vrot.lane.b32.xlu0 %v6, 120
    %v8 = vpop.permute.xlu0 %7
    %vm9 = vcmask 1048512
    %10 = vst.msk [vmem:[#allocation0] sm:$0x1] %vm9, %v8
    %s11 = scalar_lea.vmem %s0, 14
    %v12 = vld [vmem:[%s11] sm:$0x1]
    %13 = vrot.lane.b32.xlu0 %v12, 112
    %v14 = vpop.permute.xlu0 %13
    %vm15 = vcmask 982912
    %16 = vst.msk [vmem:[#allocation0] sm:$0x1] %vm15, %v14
    %s17 = scalar_lea.vmem %s0, 13
    %v18 = vld [vmem:[%s17] sm:$0x1]
    %19 = vrot.lane.b32.xlu0 %v18, 104
    %v20 = vpop.permute.xlu0 %19
    %vm21 = vcmask 917312
    %22 = vst.msk [vmem:[#allocation0] sm:$0x1] %vm21, %v20
    %s23 = scalar_lea.vmem %s0, 12
    %v24 = vld [vmem:[%s23] sm:$0x1]
    %25 = vrot.lane.b32.xlu0 %v24, 96
    %v26 = vpop.permute.xlu0 %25
    %vm27 = vcmask 851712
    %28 = vst.msk [vmem:[#allocation0] sm:$0x1] %vm27, %v26
    %s29 = scalar_lea.vmem %s0, 11
    %v30 = vld [vmem:[%s29] sm:$0x1]
    %31 = vrot.lane.b32.xlu0 %v30, 88
    %v32 = vpop.permute.xlu0 %31
    %vm33 = vcmask 786112
    %34 = vst.msk [vmem:[#allocation0] sm:$0x1] %vm33, %v32
    %s35 = scalar_lea.vmem %s0, 10
    %v36 = vld [vmem:[%s35] sm:$0x1]
    %37 = vrot.lane.b32.xlu0 %v36, 80
    %v38 = vpop.permute.xlu0 %37
    %vm39 = vcmask 720512
    %40 = vst.msk [vmem:[#allocation0] sm:$0x1] %vm39, %v38
    %s41 = scalar_lea.vmem %s0, 9
    %v42 = vld [vmem:[%s41] sm:$0x1]
    %43 = vrot.lane.b32.xlu0 %v42, 72
    %v44 = vpop.permute.xlu0 %43
    %vm45 = vcmask 654912
    %46 = vst.msk [vmem:[#allocation0] sm:$0x1] %vm45, %v44
    %s47 = scalar_lea.vmem %s0, 8
    %v48 = vld [vmem:[%s47] sm:$0x1]
    %49 = vrot.lane.b32.xlu0 %v48, 64
    %v50 = vpop.permute.xlu0 %49
    %vm51 = vcmask 589312
    %52 = vst.msk [vmem:[#allocation0] sm:$0x1] %vm51, %v50
    %s53 = scalar_lea.vmem %s0, 7
    %v54 = vld [vmem:[%s53] sm:$0x1]
    %55 = vrot.lane.b32.xlu0 %v54, 56
    %v56 = vpop.permute.xlu0 %55
    %vm57 = vcmask 523712
    %58 = vst.msk [vmem:[#allocation0] sm:$0x1] %vm57, %v56
    %s59 = scalar_lea.vmem %s0, 6
    %v60 = vld [vmem:[%s59] sm:$0x1]
    %61 = vrot.lane.b32.xlu0 %v60, 48
    %v62 = vpop.permute.xlu0 %61
    %vm63 = vcmask 458112
    %64 = vst.msk [vmem:[#allocation0] sm:$0x1] %vm63, %v62
    %s65 = scalar_lea.vmem %s0, 5
    %v66 = vld [vmem:[%s65] sm:$0x1]
    %67 = vrot.lane.b32.xlu0 %v66, 40
    %v68 = vpop.permute.xlu0 %67
    %vm69 = vcmask 392512
    %70 = vst.msk [vmem:[#allocation0] sm:$0x1] %vm69, %v68
    %s71 = scalar_lea.vmem %s0, 4
    %v72 = vld [vmem:[%s71] sm:$0x1]
    %73 = vrot.lane.b32.xlu0 %v72, 32
    %v74 = vpop.permute.xlu0 %73
    %vm75 = vcmask 326912
    %76 = vst.msk [vmem:[#allocation0] sm:$0x1] %vm75, %v74
    %s77 = scalar_lea.vmem %s0, 3
    %v78 = vld [vmem:[%s77] sm:$0x1]
    %79 = vrot.lane.b32.xlu0 %v78, 24
    %v80 = vpop.permute.xlu0 %79
    %vm81 = vcmask 261312
    %82 = vst.msk [vmem:[#allocation0] sm:$0x1] %vm81, %v80
    %s83 = scalar_lea.vmem %s0, 2
    %v84 = vld [vmem:[%s83] sm:$0x1]
    %85 = vrot.lane.b32.xlu0 %v84, 16
    %v86 = vpop.permute.xlu0 %85
    %vm87 = vcmask 195712
    %88 = vst.msk [vmem:[#allocation0] sm:$0x1] %vm87, %v86
    %s89 = scalar_lea.vmem %s0, 1
    %v90 = vld [vmem:[%s89] sm:$0x1]
    %91 = vrot.lane.b32.xlu0 %v90, 8
    %v92 = vpop.permute.xlu0 %91
    %vm93 = vcmask 130112
    %94 = vst.msk [vmem:[#allocation0] sm:$0x1] %vm93, %v92
    %s96 = sshllo.u32 0, 1
    %v98 = vld [vmem:[#allocation0] sm:%s96]
    %s99 = sshllo.u32 0, 1
    %100 = vst [vmem:[%s1] sm:%s99] %v98

// kernel: basic_block_forward.1
$region0: #{basic_block_forward.1}
  #allocation0 [shape = 'u32[]', space=smem, size = 0x4, offset = 0x4, fixed_abs, tag = 'smem constant byte address 0x4 - core index']
  #allocation1 [shape = 'u32[144,128]{1,0:T(1,128)}', space=vmem, size = 0x12000, scoped, tag = 'internal scratch']
  %s0 = inlined_call_operand.vmem [shape: f32[32,64], index: 0, kind: input, shape index: {}]
  %s1 = inlined_call_operand.vmem [shape: f32[1,64], index: 1, kind: input, shape index: {}]
  %s2 = inlined_call_operand.vmem [shape: f32[1,64], index: 2, kind: input, shape index: {}]
  %s3 = inlined_call_operand.vmem [shape: f32[1,128], index: 3, kind: input, shape index: {}]
  %s4 = inlined_call_operand.vmem [shape: f32[3,64,128], index: 4, kind: input, shape index: {}]
  %s5 = inlined_call_operand.vmem [shape: f32[3,128,128], index: 5, kind: input, shape index: {}]
  %s6 = inlined_call_operand.vmem [shape: f32[64,128], index: 6, kind: input, shape index: {}]
  %s7 = inlined_call_operand.vmem [shape: f32[2,16,16], index: 7, kind: input, shape index: {}]
  %s8 = inlined_call_operand.vmem [shape: f32[32,128], index: 8, kind: output, shape index: {}]
  %s9 = sld [smem:[#allocation0]]
  $region65: #{basic_block_forward.1} parent=0
    _
  %s11 = ssub.s32 1, %s9
  %s12 = scalar_select 0, %s11, %s9
  loop: start=0, step=1, limit=4
  $region2: #{basic_block_forward.1} parent=0 // loop_pre_header
    _
  $region3: #{basic_block_forward.1} parent=0 // loop_header
    %s14 = sphi 0, %s18
    %p15 = scmp.ge.s32.totalorder %s14, 4
    %s24 = sphi 0, %s26
    %s27 = sphi 0, %s24
    %s28 = sphi 0, %s27
    %s44 = sphi 0, %s28
    %s48 = sphi 0, %s48
    %s50 = sphi 0, %s48
    %s51 = sphi 0, %s50
    %s65 = sphi 0, %s51
    %s69 = sphi 0, %s69
    %s71 = sphi 0, %s69
    %s72 = sphi 0, %s71
    %s86 = sphi 0, %s72
    %s90 = sphi 0, %s90
    %s92 = sphi 0, %s90
    %s93 = sphi 0, %s92
    %s107 = sphi 0, %s93
    %s111 = sphi 0, %s111
    %s113 = sphi 0, %s111
    %s114 = sphi 0, %s113
    %s128 = sphi 0, %s114
    %s132 = sphi 0, %s132
    %s134 = sphi 0, %s132
    %s135 = sphi 0, %s134
    %s149 = sphi 0, %s135
    %s153 = sphi 0, %s153
    %s155 = sphi 0, %s153
    %s156 = sphi 0, %s155
    %s170 = sphi 0, %s156
    %s174 = sphi 0, %s174
    %s176 = sphi 0, %s174
    %s177 = sphi 0, %s176
    %s191 = sphi 0, %s177
    %s197 = sphi 0, %s199
    %s200 = sphi 0, %s197
    %s201 = sphi 0, %s200
    %s217 = sphi 0, %s201
  $region4: #{basic_block_forward.1} parent=0 // loop_header_branch
    %17 = sbr.rel (%p15) target = $region8
  $region5: #{basic_block_forward.1} parent=0 // loop_body
    %s19 = ssub.s32 %s14, 1
    %s20 = ssub.s32 %s14, 2
    %s21 = sadd.s32 %s14, 1
    %s22 = ssub.s32 %s14, %s21
    %p23 = scmp.eq.s32.totalorder %s22, 0
    %s25 = sadd.s32 %s24, 1
    %s26 = scalar_select %p23, %s24, %s25
    %p29 = pneg %p23
    %p30 = scmp.eq.s32.totalorder %s14, 1
    %p31 = por %p29, %p30
    %p32 = scmp.ne.s32.totalorder %s24, %s27
    %p33 = scmp.eq.s32.totalorder %s14, 0
    %p34 = por %p32, %p33
    %p35 = scmp.ne.s32.totalorder %s24, %s27
    %p36 = scmp.eq.s32.totalorder %s19, 1
    %p37 = por %p35, %p36
    %p38 = scmp.ne.s32.totalorder %s27, %s28
    %p39 = scmp.eq.s32.totalorder %s19, 0
    %p40 = por %p38, %p39
    %p41 = scmp.ne.s32.totalorder %s27, %s28
    %p42 = scmp.eq.s32.totalorder %s20, 1
    %p43 = por %p41, %p42
    %p45 = scmp.ne.s32.totalorder %s28, %s44
    %p46 = scmp.eq.s32.totalorder %s20, 0
    %p47 = por %p45, %p46
    %s49 = sadd.s32 %s48, 1
    %p52 = scmp.eq.s32.totalorder %s14, 1
    %p53 = scmp.ne.s32.totalorder %s48, %s50
    %p54 = scmp.eq.s32.totalorder %s14, 0
    %p55 = por %p53, %p54
    %p56 = scmp.ne.s32.totalorder %s48, %s50
    %p57 = scmp.eq.s32.totalorder %s19, 1
    %p58 = por %p56, %p57
    %p59 = scmp.ne.s32.totalorder %s50, %s51
    %p60 = scmp.eq.s32.totalorder %s19, 0
    %p61 = por %p59, %p60
    %p62 = scmp.ne.s32.totalorder %s50, %s51
    %p63 = scmp.eq.s32.totalorder %s20, 1
    %p64 = por %p62, %p63
    %p66 = scmp.ne.s32.totalorder %s51, %s65
    %p67 = scmp.eq.s32.totalorder %s20, 0
    %p68 = por %p66, %p67
    %s70 = sadd.s32 %s69, 1
    %p73 = scmp.eq.s32.totalorder %s14, 1
    %p74 = scmp.ne.s32.totalorder %s69, %s71
    %p75 = scmp.eq.s32.totalorder %s14, 0
    %p76 = por %p74, %p75
    %p77 = scmp.ne.s32.totalorder %s69, %s71
    %p78 = scmp.eq.s32.totalorder %s19, 1
    %p79 = por %p77, %p78
    %p80 = scmp.ne.s32.totalorder %s71, %s72
    %p81 = scmp.eq.s32.totalorder %s19, 0
    %p82 = por %p80, %p81
    %p83 = scmp.ne.s32.totalorder %s71, %s72
    %p84 = scmp.eq.s32.totalorder %s20, 1
    %p85 = por %p83, %p84
    %p87 = scmp.ne.s32.totalorder %s72, %s86
    %p88 = scmp.eq.s32.totalorder %s20, 0
    %p89 = por %p87, %p88
    %s91 = sadd.s32 %s90, 1
    %p94 = scmp.eq.s32.totalorder %s14, 1
    %p95 = scmp.ne.s32.totalorder %s90, %s92
    %p96 = scmp.eq.s32.totalorder %s14, 0
    %p97 = por %p95, %p96
    %p98 = scmp.ne.s32.totalorder %s90, %s92
    %p99 = scmp.eq.s32.totalorder %s19, 1
    %p100 = por %p98, %p99
    %p101 = scmp.ne.s32.totalorder %s92, %s93
    %p102 = scmp.eq.s32.totalorder %s19, 0
    %p103 = por %p101, %p102
    %p104 = scmp.ne.s32.totalorder %s92, %s93
    %p105 = scmp.eq.s32.totalorder %s20, 1
    %p106 = por %p104, %p105
    %p108 = scmp.ne.s32.totalorder %s93, %s107
    %p109 = scmp.eq.s32.totalorder %s20, 0
    %p110 = por %p108, %p109
    %s112 = sadd.s32 %s111, 1
    %p115 = scmp.eq.s32.totalorder %s14, 1
    %p116 = scmp.ne.s32.totalorder %s111, %s113
    %p117 = scmp.eq.s32.totalorder %s14, 0
    %p118 = por %p116, %p117
    %p119 = scmp.ne.s32.totalorder %s111, %s113
    %p120 = scmp.eq.s32.totalorder %s19, 1
    %p121 = por %p119, %p120
    %p122 = scmp.ne.s32.totalorder %s113, %s114
    %p123 = scmp.eq.s32.totalorder %s19, 0
    %p124 = por %p122, %p123
    %p125 = scmp.ne.s32.totalorder %s113, %s114
    %p126 = scmp.eq.s32.totalorder %s20, 1
    %p127 = por %p125, %p126
    %p129 = scmp.ne.s32.totalorder %s114, %s128
    %p130 = scmp.eq.s32.totalorder %s20, 0
    %p131 = por %p129, %p130
    %s133 = sadd.s32 %s132, 1
    %p136 = scmp.eq.s32.totalorder %s14, 1
    %p137 = scmp.ne.s32.totalorder %s132, %s134
    %p138 = scmp.eq.s32.totalorder %s14, 0
    %p139 = por %p137, %p138
    %p140 = scmp.ne.s32.totalorder %s132, %s134
    %p141 = scmp.eq.s32.totalorder %s19, 1
    %p142 = por %p140, %p141
    %p143 = scmp.ne.s32.totalorder %s134, %s135
    %p144 = scmp.eq.s32.totalorder %s19, 0
    %p145 = por %p143, %p144
    %p146 = scmp.ne.s32.totalorder %s134, %s135
    %p147 = scmp.eq.s32.totalorder %s20, 1
    %p148 = por %p146, %p147
    %p150 = scmp.ne.s32.totalorder %s135, %s149
    %p151 = scmp.eq.s32.totalorder %s20, 0
    %p152 = por %p150, %p151
    %s154 = sadd.s32 %s153, 1
    %p157 = scmp.eq.s32.totalorder %s14, 1
    %p158 = scmp.ne.s32.totalorder %s153, %s155
    %p159 = scmp.eq.s32.totalorder %s14, 0
    %p160 = por %p158, %p159
    %p161 = scmp.ne.s32.totalorder %s153, %s155
    %p162 = scmp.eq.s32.totalorder %s19, 1
    %p163 = por %p161, %p162
    %p164 = scmp.ne.s32.totalorder %s155, %s156
    %p165 = scmp.eq.s32.totalorder %s19, 0
    %p166 = por %p164, %p165
    %p167 = scmp.ne.s32.totalorder %s155, %s156
    %p168 = scmp.eq.s32.totalorder %s20, 1
    %p169 = por %p167, %p168
    %p171 = scmp.ne.s32.totalorder %s156, %s170
    %p172 = scmp.eq.s32.totalorder %s20, 0
    %p173 = por %p171, %p172
    %s175 = sadd.s32 %s174, 1
    %p178 = scmp.eq.s32.totalorder %s14, 1
    %p179 = scmp.ne.s32.totalorder %s174, %s176
    %p180 = scmp.eq.s32.totalorder %s14, 0
    %p181 = por %p179, %p180
    %p182 = scmp.ne.s32.totalorder %s174, %s176
    %p183 = scmp.eq.s32.totalorder %s19, 1
    %p184 = por %p182, %p183
    %p185 = scmp.ne.s32.totalorder %s176, %s177
    %p186 = scmp.eq.s32.totalorder %s19, 0
    %p187 = por %p185, %p186
    %p188 = scmp.ne.s32.totalorder %s176, %s177
    %p189 = scmp.eq.s32.totalorder %s20, 1
    %p190 = por %p188, %p189
    %p192 = scmp.ne.s32.totalorder %s177, %s191
    %p193 = scmp.eq.s32.totalorder %s20, 0
    %p194 = por %p192, %p193
    %s195 = ssub.s32 %s14, %s21
    %p196 = scmp.eq.s32.totalorder %s195, 0
    %s198 = sadd.s32 %s197, 1
    %s199 = scalar_select %p196, %s197, %s198
    %p202 = pneg %p196
    %p203 = scmp.eq.s32.totalorder %s14, 1
    %p204 = por %p202, %p203
    %p205 = scmp.ne.s32.totalorder %s197, %s200
    %p206 = scmp.eq.s32.totalorder %s14, 0
    %p207 = por %p205, %p206
    %p208 = scmp.ne.s32.totalorder %s197, %s200
    %p209 = scmp.eq.s32.totalorder %s19, 1
    %p210 = por %p208, %p209
    %p211 = scmp.ne.s32.totalorder %s200, %s201
    %p212 = scmp.eq.s32.totalorder %s19, 0
    %p213 = por %p211, %p212
    %p214 = scmp.ne.s32.totalorder %s200, %s201
    %p215 = scmp.eq.s32.totalorder %s20, 1
    %p216 = por %p214, %p215
    %p218 = scmp.ne.s32.totalorder %s201, %s217
    %p219 = scmp.eq.s32.totalorder %s20, 0
    %p220 = por %p218, %p219
    %p221 = scmp.le.s32.totalorder 1, %s14
    %p222 = scmp.lt.s32.totalorder %s14, 3
    %p223 = pnand %p221, %p222
    %p224 = pneg %p223
    // Predicated region
    $region9: #{basic_block_forward.1} parent=5 // pred_check
      _
    $region10: #{basic_block_forward.1} parent=5 // pred_check_branch
      %226 = sbr.rel (%p223) target = $region12
    $region11: #{basic_block_forward.1} parent=5 // pred_region
      %s227 = ssub.s32 %s14, 1
      // Predicated region
      $region13: #{basic_block_forward.1} parent=11 // pred_check
        %p228 = pneg %p61
      $region14: #{basic_block_forward.1} parent=11 // pred_check_branch
        %230 = sbr.rel (%p228) target = $region16
      $region15: #{basic_block_forward.1} parent=11 // pred_region
        _
      $region16: #{basic_block_forward.1} parent=11 // pred_fallthru
        _
      // Predicated region
      $region17: #{basic_block_forward.1} parent=11 // pred_check
        %p231 = pneg %p82
      $region18: #{basic_block_forward.1} parent=11 // pred_check_branch
        %233 = sbr.rel (%p231) target = $region20
      $region19: #{basic_block_forward.1} parent=11 // pred_region
        _
      $region20: #{basic_block_forward.1} parent=11 // pred_fallthru
        _
      // Predicated region
      $region21: #{basic_block_forward.1} parent=11 // pred_check
        %p234 = pneg %p103
      $region22: #{basic_block_forward.1} parent=11 // pred_check_branch
        %236 = sbr.rel (%p234) target = $region24
      $region23: #{basic_block_forward.1} parent=11 // pred_region
        _
      $region24: #{basic_block_forward.1} parent=11 // pred_fallthru
        _
      // Predicated region
      $region25: #{basic_block_forward.1} parent=11 // pred_check
        %p237 = pneg %p124
      $region26: #{basic_block_forward.1} parent=11 // pred_check_branch
        %239 = sbr.rel (%p237) target = $region28
      $region27: #{basic_block_forward.1} parent=11 // pred_region
        _
      $region28: #{basic_block_forward.1} parent=11 // pred_fallthru
        _
      // Predicated region
      $region29: #{basic_block_forward.1} parent=11 // pred_check
        %p240 = pneg %p145
      $region30: #{basic_block_forward.1} parent=11 // pred_check_branch
        %242 = sbr.rel (%p240) target = $region32
      $region31: #{basic_block_forward.1} parent=11 // pred_region
        _
      $region32: #{basic_block_forward.1} parent=11 // pred_fallthru
        _
      // Predicated region
      $region33: #{basic_block_forward.1} parent=11 // pred_check
        %p243 = pneg %p166
      $region34: #{basic_block_forward.1} parent=11 // pred_check_branch
        %245 = sbr.rel (%p243) target = $region36
      $region35: #{basic_block_forward.1} parent=11 // pred_region
        _
      $region36: #{basic_block_forward.1} parent=11 // pred_fallthru
        _
      // Predicated region
      $region37: #{basic_block_forward.1} parent=11 // pred_check
        %p246 = pneg %p187
      $region38: #{basic_block_forward.1} parent=11 // pred_check_branch
        %248 = sbr.rel (%p246) target = $region40
      $region39: #{basic_block_forward.1} parent=11 // pred_region
        _
      $region40: #{basic_block_forward.1} parent=11 // pred_fallthru
        _
    $region12: #{basic_block_forward.1} parent=5 // pred_fallthru
      _
    %p249 = scmp.lt.s32.totalorder %s14, 2
    // Predicated region
    $region41: #{basic_block_forward.1} parent=5 // pred_check
      %p250 = pneg %p249
    $region42: #{basic_block_forward.1} parent=5 // pred_check_branch
      %252 = sbr.rel (%p250) target = $region44
    $region43: #{basic_block_forward.1} parent=5 // pred_region
      // Predicated region
      $region45: #{basic_block_forward.1} parent=43 // pred_check
        %p253 = pneg %p34
      $region46: #{basic_block_forward.1} parent=43 // pred_check_branch
        %255 = sbr.rel (%p253) target = $region48
      $region47: #{basic_block_forward.1} parent=43 // pred_region
        %s256 = smul.u32 2, %s14
        %p257 = scmp.lt.s32.totalorder %s256, 3
        %s258 = scalar_select %p257, %s256, 3
        %s259 = smul.addr %s258, 8
        %s260 = scalar_lea.vmem %s0, %s259
        %s261 = smul.u32 2, %s14
      $region48: #{basic_block_forward.1} parent=43 // pred_fallthru
        _
    $region44: #{basic_block_forward.1} parent=5 // pred_fallthru
      _
    %p262 = scmp.le.s32.totalorder 1, %s14
    %p263 = scmp.lt.s32.totalorder %s14, 3
    %p264 = pnand %p262, %p263
    %p265 = pneg %p264
    // Predicated region
    $region49: #{basic_block_forward.1} parent=5 // pred_check
      _
    $region50: #{basic_block_forward.1} parent=5 // pred_check_branch
      %267 = sbr.rel (%p264) target = $region52
    $region51: #{basic_block_forward.1} parent=5 // pred_region
      %s268 = ssub.s32 %s14, 1
      %s269 = smul.u32 2, %s19
      %p270 = scmp.lt.s32.totalorder %s269, 3
      %s271 = scalar_select %p270, %s269, 3
      %s272 = smul.addr %s271, 8
      %s273 = scalar_lea.vmem %s0, %s272
      %p274 = pneg %p40
      %p275 = pneg %p37
      %p276 = pneg %p61
      %p277 = pneg %p58
      %p278 = pneg %p82
      %p279 = pneg %p79
      %p280 = pneg %p103
      %p281 = pneg %p100
      %p282 = pneg %p124
      %p283 = pneg %p121
      %p284 = pneg %p145
      %p285 = pneg %p142
      %p286 = pneg %p166
      %p287 = pneg %p163
      %p288 = pneg %p187
      %p289 = pneg %p184
      %p290 = pneg %p213
      %p291 = pneg %p210
      %s292 = smul.u32 2, %s19
      %p293 = scmp.lt.s32.totalorder %s292, 3
      %s294 = scalar_select %p293, %s292, 3
      %s295 = smul.addr %s294, 8
      %s296 = scalar_lea.vmem %s8, %s295
      %s297 = smul.u32 2, %s19
      %p298 = scmp.lt.s32.totalorder %s297, 3
      %s299 = scalar_select %p298, %s297, 3
      %s300 = smul.addr %s299, 8
      %s301 = scalar_lea.vmem %s0, %s300
      %s302 = smul.u32 2, %s19
      %s303 = smul.u32 2, %s19
      %p304 = scmp.lt.s32.totalorder %s303, 3
      %s305 = scalar_select %p304, %s303, 3
      %s306 = smul.addr %s305, 8
      %s307 = scalar_lea.vmem %s8, %s306
      %s308 = smul.u32 2, %s19
      %v309 = vld [vmem:[%s301] sm:$0xff]
      %v310 = vld [vmem:[%s301 + $0x8] sm:$0xff]
      %v311 = vld [vmem:[%s1] sm:$0x1]
      %v313 = vlaneseq
      %v314 = vshrl.u32 %v313, 7
      %v315 = vsub.s32 0, %v314
      %v316 = vrot.slane %v311, %v315
      %v318 = vmul.f32 %v309, %v316
      %v319 = vmul.f32 %v310, %v316
      %v320 = vld [vmem:[%s2] sm:$0x1]
      %v322 = vlaneseq
      %v323 = vshrl.u32 %v322, 7
      %v324 = vsub.s32 0, %v323
      %v325 = vrot.slane %v320, %v324
      %v327 = vadd.f32 %v318, %v325
      %v328 = vadd.f32 %v319, %v325
      %vm329 = vcmp.gt.f32.partialorder %v327, 0.0
      %vm330 = vcmp.gt.f32.partialorder %v328, 0.0
      %v331 = vmul.f32 %v327, 0.1
      %v332 = vmul.f32 %v328, 0.1
      %v333 = vsel %vm329, %v327, %v331
      %v334 = vsel %vm330, %v328, %v332
      %v335 = vld [vmem:[%s7] sm:$0xff]
      %v336 = vld [vmem:[%s7 + $0x8] sm:$0xff]
      %s337 = scalar_lea.vmem %s7, 16
      %v338 = vld [vmem:[%s337] sm:$0xff]
      %v339 = vld [vmem:[%s337 + $0x8] sm:$0xff]
      %v340 = vld [vmem:[%s4] sm:$0xff]
      %v341 = vld [vmem:[%s4 + $0x8] sm:$0xff]
      %v342 = vld [vmem:[%s4 + $0x10] sm:$0xff]
      %v343 = vld [vmem:[%s4 + $0x18] sm:$0xff]
      %v344 = vld [vmem:[%s4 + $0x20] sm:$0xff]
      %v345 = vld [vmem:[%s4 + $0x28] sm:$0xff]
      %v346 = vld [vmem:[%s4 + $0x30] sm:$0xff]
      %v347 = vld [vmem:[%s4 + $0x38] sm:$0xff]
      %vm348 = vcmask 523264
      %v350 = vsel %vm348, %v333, 0
      %v353 = vsel %vm348, %v334, 0
      %355 = vmatprep.subr.mxu0 0.0
      %356 = vmatpush1.msra.mxu0 %v340
      %357 = vmatprep.subr.mxu0 0.0
      %358 = vmatpush1.msra.mxu0 %v341
      %359 = vmatprep.subr.mxu0 0.0
      %360 = vmatpush1.msra.mxu0 %v342
      %361 = vmatprep.subr.mxu0 0.0
      %362 = vmatpush1.msra.mxu0 %v343
      %363 = vmatprep.subr.mxu0 0.0
      %364 = vmatpush1.msra.mxu0 %v344
      %365 = vmatprep.subr.mxu0 0.0
      %366 = vmatpush1.msra.mxu0 %v345
      %367 = vmatprep.subr.mxu0 0.0
      %368 = vmatpush1.msra.mxu0 %v346
      %369 = vmatprep.subr.mxu0 0.0
      %370 = vmatpush1.msra.mxu0 %v347
      %371 = vmatprep.subr.mxu0 0.0
      %372 = vmatpush1.msra.mxu0 0.0
      %373 = vmatprep.subr.mxu0 0.0
      %374 = vmatpush1.msra.mxu0 0.0
      %375 = vmatprep.subr.mxu0 0.0
      %376 = vmatpush1.msra.mxu0 0.0
      %377 = vmatprep.subr.mxu0 0.0
      %378 = vmatpush1.msra.mxu0 0.0
      %379 = vmatprep.subr.mxu0 0.0
      %380 = vmatpush1.msra.mxu0 0.0
      %381 = vmatprep.subr.mxu0 0.0
      %382 = vmatpush1.msra.mxu0 0.0
      %383 = vmatprep.subr.mxu0 0.0
      %384 = vmatpush1.msra.mxu0 0.0
      %385 = vmatprep.subr.mxu0 0.0
      %386 = vmatpush1.msra.mxu0 0.0
      %387 = vmatprep.subr.mxu0 0.0
      %388 = vmatpush1.msra.mxu0 0.0
      %389 = vmatprep.subr.mxu0 0.0
      %390 = vmatpush1.msra.mxu0 0.0
      %391 = vmatprep.subr.mxu0 0.0
      %392 = vmatpush1.msra.mxu0 0.0
      %393 = vmatprep.subr.mxu0 0.0
      %394 = vmatpush1.msra.mxu0 0.0
      %395 = vmatprep.subr.mxu0 0.0
      %396 = vmatpush1.msra.mxu0 0.0
      %397 = vmatprep.subr.mxu0 0.0
      %398 = vmatpush1.msra.mxu0 0.0
      %399 = vmatprep.subr.mxu0 0.0
      %400 = vmatpush1.msra.mxu0 0.0
      %401 = vmatprep.subr.mxu0 0.0
      %402 = vmatpush1.msra.mxu0 0.0
      %403 = vmatprep.subr.mxu0 0.0
      %404 = vmatpush1.msra.mxu0 0.0
      %405 = vmatprep.subr.mxu0 0.0
      %406 = vmatpush1.msra.mxu0 0.0
      %407 = vmatprep.subr.mxu0 0.0
      %408 = vmatpush1.msra.mxu0 0.0
      %409 = vmatprep.subr.mxu0 0.0
      %410 = vmatpush1.msra.mxu0 0.0
      %411 = vmatprep.subr.mxu0 0.0
      %412 = vmatpush1.msra.mxu0 0.0
      %413 = vmatprep.subr.mxu0 0.0
      %414 = vmatpush1.msra.mxu0 0.0
      %415 = vmatprep.subr.mxu0 0.0
      %416 = vmatpush1.msra.mxu0 0.0
      %417 = vmatprep.subr.mxu0 0.0
      %418 = vmatpush1.msra.mxu0 0.0
      %419 = vmatprep.mubr.f32.mxu0 0.0
      %420 = vmatmul.mubr.f32.gmra.mrb[0].mxu0 %v350
      %v421 = vpop.f32.mrb[0].mxu0
      %v422 = vadd.f32 0.0, %v421
      %v423 = vpop.f32.mrb[0].mxu0
      %424 = vmatprep.mubr.f32.mxu0 0.0
      %425 = vmatmul.mubr.f32.gmra.mrb[0].mxu0 %v353
      %v426 = vpop.f32.mrb[0].mxu0
      %v427 = vadd.f32 0.0, %v426
      %v428 = vpop.f32.mrb[0].mxu0
      %429 = vdwg.mxu0
      %s430 = scalar_lea.vmem %s4, 64
      %v431 = vld [vmem:[%s430] sm:$0xff]
      %v432 = vld [vmem:[%s430 + $0x8] sm:$0xff]
      %v433 = vld [vmem:[%s430 + $0x10] sm:$0xff]
      %v434 = vld [vmem:[%s430 + $0x18] sm:$0xff]
      %v435 = vld [vmem:[%s430 + $0x20] sm:$0xff]
      %v436 = vld [vmem:[%s430 + $0x28] sm:$0xff]
      %v437 = vld [vmem:[%s430 + $0x30] sm:$0xff]
      %v438 = vld [vmem:[%s430 + $0x38] sm:$0xff]
      %s439 = scalar_lea.vmem %s4, 128
      %v440 = vld [vmem:[%s439] sm:$0xff]
      %v441 = vld [vmem:[%s439 + $0x8] sm:$0xff]
      %v442 = vld [vmem:[%s439 + $0x10] sm:$0xff]
      %v443 = vld [vmem:[%s439 + $0x18] sm:$0xff]
      %v444 = vld [vmem:[%s439 + $0x20] sm:$0xff]
      %v445 = vld [vmem:[%s439 + $0x28] sm:$0xff]
      %v446 = vld [vmem:[%s439 + $0x30] sm:$0xff]
      %v447 = vld [vmem:[%s439 + $0x38] sm:$0xff]
      %448 = vmatprep.subr.mxu0 0.0
      %449 = vmatpush1.msra.mxu0 %v440
      %450 = vmatprep.subr.mxu0 0.0
      %451 = vmatpush1.msra.mxu0 %v441
      %452 = vmatprep.subr.mxu0 0.0
      %453 = vmatpush1.msra.mxu0 %v442
      %454 = vmatprep.subr.mxu0 0.0
      %455 = vmatpush1.msra.mxu0 %v443
      %456 = vmatprep.subr.mxu0 0.0
      %457 = vmatpush1.msra.mxu0 %v444
      %458 = vmatprep.subr.mxu0 0.0
      %459 = vmatpush1.msra.mxu0 %v445
      %460 = vmatprep.subr.mxu0 0.0
      %461 = vmatpush1.msra.mxu0 %v446
      %462 = vmatprep.subr.mxu0 0.0
      %463 = vmatpush1.msra.mxu0 %v447
      %464 = vmatprep.subr.mxu0 0.0
      %465 = vmatpush1.msra.mxu0 0.0
      %466 = vmatprep.subr.mxu0 0.0
      %467 = vmatpush1.msra.mxu0 0.0
      %468 = vmatprep.subr.mxu0 0.0
      %469 = vmatpush1.msra.mxu0 0.0
      %470 = vmatprep.subr.mxu0 0.0
      %471 = vmatpush1.msra.mxu0 0.0
      %472 = vmatprep.subr.mxu0 0.0
      %473 = vmatpush1.msra.mxu0 0.0
      %474 = vmatprep.subr.mxu0 0.0
      %475 = vmatpush1.msra.mxu0 0.0
      %476 = vmatprep.subr.mxu0 0.0
      %477 = vmatpush1.msra.mxu0 0.0
      %478 = vmatprep.subr.mxu0 0.0
      %479 = vmatpush1.msra.mxu0 0.0
      %480 = vmatprep.subr.mxu0 0.0
      %481 = vmatpush1.msra.mxu0 0.0
      %482 = vmatprep.subr.mxu0 0.0
      %483 = vmatpush1.msra.mxu0 0.0
      %484 = vmatprep.subr.mxu0 0.0
      %485 = vmatpush1.msra.mxu0 0.0
      %486 = vmatprep.subr.mxu0 0.0
      %487 = vmatpush1.msra.mxu0 0.0
      %488 = vmatprep.subr.mxu0 0.0
      %489 = vmatpush1.msra.mxu0 0.0
      %490 = vmatprep.subr.mxu0 0.0
      %491 = vmatpush1.msra.mxu0 0.0
      %492 = vmatprep.subr.mxu0 0.0
      %493 = vmatpush1.msra.mxu0 0.0
      %494 = vmatprep.subr.mxu0 0.0
      %495 = vmatpush1.msra.mxu0 0.0
      %496 = vmatprep.subr.mxu0 0.0
      %497 = vmatpush1.msra.mxu0 0.0
      %498 = vmatprep.subr.mxu0 0.0
      %499 = vmatpush1.msra.mxu0 0.0
      %500 = vmatprep.subr.mxu0 0.0
      %501 = vmatpush1.msra.mxu0 0.0
      %502 = vmatprep.subr.mxu0 0.0
      %503 = vmatpush1.msra.mxu0 0.0
      %504 = vmatprep.subr.mxu0 0.0
      %505 = vmatpush1.msra.mxu0 0.0
      %506 = vmatprep.subr.mxu0 0.0
      %507 = vmatpush1.msra.mxu0 0.0
      %508 = vmatprep.subr.mxu0 0.0
      %509 = vmatpush1.msra.mxu0 0.0
      %510 = vmatprep.subr.mxu0 0.0
      %511 = vmatpush1.msra.mxu0 0.0
      %512 = vmatprep.mubr.f32.mxu0 0.0
      %513 = vmatmul.mubr.f32.gmra.mrb[0].mxu0 %v350
      %v514 = vpop.f32.mrb[0].mxu0
      %v515 = vadd.f32 0.0, %v514
      %v516 = vpop.f32.mrb[0].mxu0
      %517 = vmatprep.mubr.f32.mxu0 0.0
      %518 = vmatmul.mubr.f32.gmra.mrb[0].mxu0 %v353
      %v519 = vpop.f32.mrb[0].mxu0
      %v520 = vadd.f32 0.0, %v519
      %v521 = vpop.f32.mrb[0].mxu0
      %522 = vdwg.mxu0
      %vm523 = vcmask 130048
      %v525 = vsel %vm523, %v335, 0
      %v528 = vsel %vm523, %v336, 0
      %530 = vmatprep.subr.mxu0 0.0
      %531 = vmatpush1.msra.mxu0 %v422
      %532 = vmatprep.subr.mxu0 0.0
      %533 = vmatpush1.msra.mxu0 %v427
      %534 = vmatprep.subr.mxu0 0.0
      %535 = vmatpush1.msra.mxu0 0.0
      %536 = vmatprep.subr.mxu0 0.0
      %537 = vmatpush1.msra.mxu0 0.0
      %538 = vmatprep.subr.mxu0 0.0
      %539 = vmatpush1.msra.mxu0 0.0
      %540 = vmatprep.subr.mxu0 0.0
      %541 = vmatpush1.msra.mxu0 0.0
      %542 = vmatprep.subr.mxu0 0.0
      %543 = vmatpush1.msra.mxu0 0.0
      %544 = vmatprep.subr.mxu0 0.0
      %545 = vmatpush1.msra.mxu0 0.0
      %546 = vmatprep.subr.mxu0 0.0
      %547 = vmatpush1.msra.mxu0 0.0
      %548 = vmatprep.subr.mxu0 0.0
      %549 = vmatpush1.msra.mxu0 0.0
      %550 = vmatprep.subr.mxu0 0.0
      %551 = vmatpush1.msra.mxu0 0.0
      %552 = vmatprep.subr.mxu0 0.0
      %553 = vmatpush1.msra.mxu0 0.0
      %554 = vmatprep.subr.mxu0 0.0
      %555 = vmatpush1.msra.mxu0 0.0
      %556 = vmatprep.subr.mxu0 0.0
      %557 = vmatpush1.msra.mxu0 0.0
      %558 = vmatprep.subr.mxu0 0.0
      %559 = vmatpush1.msra.mxu0 0.0
      %560 = vmatprep.subr.mxu0 0.0
      %561 = vmatpush1.msra.mxu0 0.0
      %562 = vmatprep.subr.mxu0 0.0
      %563 = vmatpush1.msra.mxu0 0.0
      %564 = vmatprep.subr.mxu0 0.0
      %565 = vmatpush1.msra.mxu0 0.0
      %566 = vmatprep.subr.mxu0 0.0
      %567 = vmatpush1.msra.mxu0 0.0
      %568 = vmatprep.subr.mxu0 0.0
      %569 = vmatpush1.msra.mxu0 0.0
      %570 = vmatprep.subr.mxu0 0.0
      %571 = vmatpush1.msra.mxu0 0.0
      %572 = vmatprep.subr.mxu0 0.0
      %573 = vmatpush1.msra.mxu0 0.0
      %574 = vmatprep.subr.mxu0 0.0
      %575 = vmatpush1.msra.mxu0 0.0
      %576 = vmatprep.subr.mxu0 0.0
      %577 = vmatpush1.msra.mxu0 0.0
      %578 = vmatprep.subr.mxu0 0.0
      %579 = vmatpush1.msra.mxu0 0.0
      %580 = vmatprep.subr.mxu0 0.0
      %581 = vmatpush1.msra.mxu0 0.0
      %582 = vmatprep.subr.mxu0 0.0
      %583 = vmatpush1.msra.mxu0 0.0
      %584 = vmatprep.subr.mxu0 0.0
      %585 = vmatpush1.msra.mxu0 0.0
      %586 = vmatprep.subr.mxu0 0.0
      %587 = vmatpush1.msra.mxu0 0.0
      %588 = vmatprep.subr.mxu0 0.0
      %589 = vmatpush1.msra.mxu0 0.0
      %590 = vmatprep.subr.mxu0 0.0
      %591 = vmatpush1.msra.mxu0 0.0
      %592 = vmatprep.subr.mxu0 0.0
      %593 = vmatpush1.msra.mxu0 0.0
      %594 = vmatprep.mubr.f32.mxu0 0.0
      %595 = vmatmul.mubr.f32.gmra.mrb[0].mxu0 %v525
      %v596 = vpop.f32.mrb[0].mxu0
      %v597 = vadd.f32 0.0, %v596
      %v598 = vpop.f32.mrb[0].mxu0
      %599 = vmatprep.mubr.f32.mxu0 0.0
      %600 = vmatmul.mubr.f32.gmra.mrb[0].mxu0 %v528
      %v601 = vpop.f32.mrb[0].mxu0
      %v602 = vadd.f32 0.0, %v601
      %v603 = vpop.f32.mrb[0].mxu0
      %604 = vdwg.mxu0
      %605 = vmatprep.subr.mxu0 0.0
      %606 = vmatpush1.msra.mxu0 %v431
      %607 = vmatprep.subr.mxu0 0.0
      %608 = vmatpush1.msra.mxu0 %v432
      %609 = vmatprep.subr.mxu0 0.0
      %610 = vmatpush1.msra.mxu0 %v433
      %611 = vmatprep.subr.mxu0 0.0
      %612 = vmatpush1.msra.mxu0 %v434
      %613 = vmatprep.subr.mxu0 0.0
      %614 = vmatpush1.msra.mxu0 %v435
      %615 = vmatprep.subr.mxu0 0.0
      %616 = vmatpush1.msra.mxu0 %v436
      %617 = vmatprep.subr.mxu0 0.0
      %618 = vmatpush1.msra.mxu0 %v437
      %619 = vmatprep.subr.mxu0 0.0
      %620 = vmatpush1.msra.mxu0 %v438
      %621 = vmatprep.subr.mxu0 0.0
      %622 = vmatpush1.msra.mxu0 0.0
      %623 = vmatprep.subr.mxu0 0.0
      %624 = vmatpush1.msra.mxu0 0.0
      %625 = vmatprep.subr.mxu0 0.0
      %626 = vmatpush1.msra.mxu0 0.0
      %627 = vmatprep.subr.mxu0 0.0
      %628 = vmatpush1.msra.mxu0 0.0
      %629 = vmatprep.subr.mxu0 0.0
      %630 = vmatpush1.msra.mxu0 0.0
      %631 = vmatprep.subr.mxu0 0.0
      %632 = vmatpush1.msra.mxu0 0.0
      %633 = vmatprep.subr.mxu0 0.0
      %634 = vmatpush1.msra.mxu0 0.0
      %635 = vmatprep.subr.mxu0 0.0
      %636 = vmatpush1.msra.mxu0 0.0
      %637 = vmatprep.subr.mxu0 0.0
      %638 = vmatpush1.msra.mxu0 0.0
      %639 = vmatprep.subr.mxu0 0.0
      %640 = vmatpush1.msra.mxu0 0.0
      %641 = vmatprep.subr.mxu0 0.0
      %642 = vmatpush1.msra.mxu0 0.0
      %643 = vmatprep.subr.mxu0 0.0
      %644 = vmatpush1.msra.mxu0 0.0
      %645 = vmatprep.subr.mxu0 0.0
      %646 = vmatpush1.msra.mxu0 0.0
      %647 = vmatprep.subr.mxu0 0.0
      %648 = vmatpush1.msra.mxu0 0.0
      %649 = vmatprep.subr.mxu0 0.0
      %650 = vmatpush1.msra.mxu0 0.0
      %651 = vmatprep.subr.mxu0 0.0
      %652 = vmatpush1.msra.mxu0 0.0
      %653 = vmatprep.subr.mxu0 0.0
      %654 = vmatpush1.msra.mxu0 0.0
      %655 = vmatprep.subr.mxu0 0.0
      %656 = vmatpush1.msra.mxu0 0.0
      %657 = vmatprep.subr.mxu0 0.0
      %658 = vmatpush1.msra.mxu0 0.0
      %659 = vmatprep.subr.mxu0 0.0
      %660 = vmatpush1.msra.mxu0 0.0
      %661 = vmatprep.subr.mxu0 0.0
      %662 = vmatpush1.msra.mxu0 0.0
      %663 = vmatprep.subr.mxu0 0.0
      %664 = vmatpush1.msra.mxu0 0.0
      %665 = vmatprep.subr.mxu0 0.0
      %666 = vmatpush1.msra.mxu0 0.0
      %667 = vmatprep.subr.mxu0 0.0
      %668 = vmatpush1.msra.mxu0 0.0
      %669 = vmatprep.mubr.f32.mxu0 0.0
      %670 = vmatmul.mubr.f32.gmra.mrb[0].mxu0 %v350
      %v671 = vpop.f32.mrb[0].mxu0
      %v672 = vadd.f32 %v597, %v671
      %v673 = vpop.f32.mrb[0].mxu0
      %674 = vmatprep.mubr.f32.mxu0 0.0
      %675 = vmatmul.mubr.f32.gmra.mrb[0].mxu0 %v353
      %v676 = vpop.f32.mrb[0].mxu0
      %v677 = vadd.f32 %v602, %v676
      %v678 = vpop.f32.mrb[0].mxu0
      %679 = vdwg.mxu0
      %v681 = vsel %vm523, %v338, 0
      %v684 = vsel %vm523, %v339, 0
      %686 = vmatprep.subr.mxu0 0.0
      %687 = vmatpush1.msra.mxu0 %v515
      %688 = vmatprep.subr.mxu0 0.0
      %689 = vmatpush1.msra.mxu0 %v520
      %690 = vmatprep.subr.mxu0 0.0
      %691 = vmatpush1.msra.mxu0 0.0
      %692 = vmatprep.subr.mxu0 0.0
      %693 = vmatpush1.msra.mxu0 0.0
      %694 = vmatprep.subr.mxu0 0.0
      %695 = vmatpush1.msra.mxu0 0.0
      %696 = vmatprep.subr.mxu0 0.0
      %697 = vmatpush1.msra.mxu0 0.0
      %698 = vmatprep.subr.mxu0 0.0
      %699 = vmatpush1.msra.mxu0 0.0
      %700 = vmatprep.subr.mxu0 0.0
      %701 = vmatpush1.msra.mxu0 0.0
      %702 = vmatprep.subr.mxu0 0.0
      %703 = vmatpush1.msra.mxu0 0.0
      %704 = vmatprep.subr.mxu0 0.0
      %705 = vmatpush1.msra.mxu0 0.0
      %706 = vmatprep.subr.mxu0 0.0
      %707 = vmatpush1.msra.mxu0 0.0
      %708 = vmatprep.subr.mxu0 0.0
      %709 = vmatpush1.msra.mxu0 0.0
      %710 = vmatprep.subr.mxu0 0.0
      %711 = vmatpush1.msra.mxu0 0.0
      %712 = vmatprep.subr.mxu0 0.0
      %713 = vmatpush1.msra.mxu0 0.0
      %714 = vmatprep.subr.mxu0 0.0
      %715 = vmatpush1.msra.mxu0 0.0
      %716 = vmatprep.subr.mxu0 0.0
      %717 = vmatpush1.msra.mxu0 0.0
      %718 = vmatprep.subr.mxu0 0.0
      %719 = vmatpush1.msra.mxu0 0.0
      %720 = vmatprep.subr.mxu0 0.0
      %721 = vmatpush1.msra.mxu0 0.0
      %722 = vmatprep.subr.mxu0 0.0
      %723 = vmatpush1.msra.mxu0 0.0
      %724 = vmatprep.subr.mxu0 0.0
      %725 = vmatpush1.msra.mxu0 0.0
      %726 = vmatprep.subr.mxu0 0.0
      %727 = vmatpush1.msra.mxu0 0.0
      %728 = vmatprep.subr.mxu0 0.0
      %729 = vmatpush1.msra.mxu0 0.0
      %730 = vmatprep.subr.mxu0 0.0
      %731 = vmatpush1.msra.mxu0 0.0
      %732 = vmatprep.subr.mxu0 0.0
      %733 = vmatpush1.msra.mxu0 0.0
      %734 = vmatprep.subr.mxu0 0.0
      %735 = vmatpush1.msra.mxu0 0.0
      %736 = vmatprep.subr.mxu0 0.0
      %737 = vmatpush1.msra.mxu0 0.0
      %738 = vmatprep.subr.mxu0 0.0
      %739 = vmatpush1.msra.mxu0 0.0
      %740 = vmatprep.subr.mxu0 0.0
      %741 = vmatpush1.msra.mxu0 0.0
      %742 = vmatprep.subr.mxu0 0.0
      %743 = vmatpush1.msra.mxu0 0.0
      %744 = vmatprep.subr.mxu0 0.0
      %745 = vmatpush1.msra.mxu0 0.0
      %746 = vmatprep.subr.mxu0 0.0
      %747 = vmatpush1.msra.mxu0 0.0
      %748 = vmatprep.subr.mxu0 0.0
      %749 = vmatpush1.msra.mxu0 0.0
      %750 = vmatprep.mubr.f32.mxu0 0.0
      %751 = vmatmul.mubr.f32.gmra.mrb[0].mxu0 %v681
      %v752 = vpop.f32.mrb[0].mxu0
      %v753 = vadd.f32 0.0, %v752
      %v754 = vpop.f32.mrb[0].mxu0
      %755 = vmatprep.mubr.f32.mxu0 0.0
      %756 = vmatmul.mubr.f32.gmra.mrb[0].mxu0 %v684
      %v757 = vpop.f32.mrb[0].mxu0
      %v758 = vadd.f32 0.0, %v757
      %v759 = vpop.f32.mrb[0].mxu0
      %760 = vdwg.mxu0
      %v761 = vadd.f32 %v672, %v753
      %v762 = vadd.f32 %v677, %v758
      %v763 = vld [vmem:[%s3] sm:$0x1]
      %v765 = vlaneseq
      %v766 = vshrl.u32 %v765, 7
      %v767 = vsub.s32 0, %v766
      %v768 = vrot.slane %v763, %v767
      %v770 = vadd.f32 %v761, %v768
      %v771 = vadd.f32 %v762, %v768
      %vm772 = vcmp.gt.f32.partialorder %v770, 0.0
      %vm773 = vcmp.gt.f32.partialorder %v771, 0.0
      %v774 = vmul.f32 %v770, 0.1
      %v775 = vmul.f32 %v771, 0.1
      %v776 = vsel %vm772, %v770, %v774
      %v777 = vsel %vm773, %v771, %v775
      %v778 = vld [vmem:[%s6] sm:$0xff]
      %v779 = vld [vmem:[%s6 + $0x8] sm:$0xff]
      %v780 = vld [vmem:[%s6 + $0x10] sm:$0xff]
      %v781 = vld [vmem:[%s6 + $0x18] sm:$0xff]
      %v782 = vld [vmem:[%s6 + $0x20] sm:$0xff]
      %v783 = vld [vmem:[%s6 + $0x28] sm:$0xff]
      %v784 = vld [vmem:[%s6 + $0x30] sm:$0xff]
      %v785 = vld [vmem:[%s6 + $0x38] sm:$0xff]
      %v786 = vld [vmem:[%s5] sm:$0xff]
      %v787 = vld [vmem:[%s5 + $0x8] sm:$0xff]
      %v788 = vld [vmem:[%s5 + $0x10] sm:$0xff]
      %v789 = vld [vmem:[%s5 + $0x18] sm:$0xff]
      %v790 = vld [vmem:[%s5 + $0x20] sm:$0xff]
      %v791 = vld [vmem:[%s5 + $0x28] sm:$0xff]
      %v792 = vld [vmem:[%s5 + $0x30] sm:$0xff]
      %v793 = vld [vmem:[%s5 + $0x38] sm:$0xff]
      %v794 = vld [vmem:[%s5 + $0x40] sm:$0xff]
      %v795 = vld [vmem:[%s5 + $0x48] sm:$0xff]
      %v796 = vld [vmem:[%s5 + $0x50] sm:$0xff]
      %v797 = vld [vmem:[%s5 + $0x58] sm:$0xff]
      %v798 = vld [vmem:[%s5 + $0x60] sm:$0xff]
      %v799 = vld [vmem:[%s5 + $0x68] sm:$0xff]
      %v800 = vld [vmem:[%s5 + $0x70] sm:$0xff]
      %v801 = vld [vmem:[%s5 + $0x78] sm:$0xff]
      %802 = vmatprep.subr.mxu0 0.0
      %803 = vmatpush1.msra.mxu0 %v786
      %804 = vmatprep.subr.mxu0 0.0
      %805 = vmatpush1.msra.mxu0 %v787
      %806 = vmatprep.subr.mxu0 0.0
      %807 = vmatpush1.msra.mxu0 %v788
      %808 = vmatprep.subr.mxu0 0.0
      %809 = vmatpush1.msra.mxu0 %v789
      %810 = vmatprep.subr.mxu0 0.0
      %811 = vmatpush1.msra.mxu0 %v790
      %812 = vmatprep.subr.mxu0 0.0
      %813 = vmatpush1.msra.mxu0 %v791
      %814 = vmatprep.subr.mxu0 0.0
      %815 = vmatpush1.msra.mxu0 %v792
      %816 = vmatprep.subr.mxu0 0.0
      %817 = vmatpush1.msra.mxu0 %v793
      %818 = vmatprep.subr.mxu0 0.0
      %819 = vmatpush1.msra.mxu0 %v794
      %820 = vmatprep.subr.mxu0 0.0
      %821 = vmatpush1.msra.mxu0 %v795
      %822 = vmatprep.subr.mxu0 0.0
      %823 = vmatpush1.msra.mxu0 %v796
      %824 = vmatprep.subr.mxu0 0.0
      %825 = vmatpush1.msra.mxu0 %v797
      %826 = vmatprep.subr.mxu0 0.0
      %827 = vmatpush1.msra.mxu0 %v798
      %828 = vmatprep.subr.mxu0 0.0
      %829 = vmatpush1.msra.mxu0 %v799
      %830 = vmatprep.subr.mxu0 0.0
      %831 = vmatpush1.msra.mxu0 %v800
      %832 = vmatprep.subr.mxu0 0.0
      %833 = vmatpush1.msra.mxu0 %v801
      %834 = vmatprep.subr.mxu0 0.0
      %835 = vmatpush1.msra.mxu0 0.0
      %836 = vmatprep.subr.mxu0 0.0
      %837 = vmatpush1.msra.mxu0 0.0
      %838 = vmatprep.subr.mxu0 0.0
      %839 = vmatpush1.msra.mxu0 0.0
      %840 = vmatprep.subr.mxu0 0.0
      %841 = vmatpush1.msra.mxu0 0.0
      %842 = vmatprep.subr.mxu0 0.0
      %843 = vmatpush1.msra.mxu0 0.0
      %844 = vmatprep.subr.mxu0 0.0
      %845 = vmatpush1.msra.mxu0 0.0
      %846 = vmatprep.subr.mxu0 0.0
      %847 = vmatpush1.msra.mxu0 0.0
      %848 = vmatprep.subr.mxu0 0.0
      %849 = vmatpush1.msra.mxu0 0.0
      %850 = vmatprep.subr.mxu0 0.0
      %851 = vmatpush1.msra.mxu0 0.0
      %852 = vmatprep.subr.mxu0 0.0
      %853 = vmatpush1.msra.mxu0 0.0
      %854 = vmatprep.subr.mxu0 0.0
      %855 = vmatpush1.msra.mxu0 0.0
      %856 = vmatprep.subr.mxu0 0.0
      %857 = vmatpush1.msra.mxu0 0.0
      %858 = vmatprep.subr.mxu0 0.0
      %859 = vmatpush1.msra.mxu0 0.0
      %860 = vmatprep.subr.mxu0 0.0
      %861 = vmatpush1.msra.mxu0 0.0
      %862 = vmatprep.subr.mxu0 0.0
      %863 = vmatpush1.msra.mxu0 0.0
      %864 = vmatprep.subr.mxu0 0.0
      %865 = vmatpush1.msra.mxu0 0.0
      %866 = vmatprep.mubr.f32.mxu0 0.0
      %867 = vmatmul.mubr.f32.gmra.mrb[0].mxu0 %v776
      %v868 = vpop.f32.mrb[0].mxu0
      %v869 = vadd.f32 0.0, %v868
      %v870 = vpop.f32.mrb[0].mxu0
      %871 = vmatprep.mubr.f32.mxu0 0.0
      %872 = vmatmul.mubr.f32.gmra.mrb[0].mxu0 %v777
      %v873 = vpop.f32.mrb[0].mxu0
      %v874 = vadd.f32 0.0, %v873
      %v875 = vpop.f32.mrb[0].mxu0
      %876 = vdwg.mxu0
      %s877 = scalar_lea.vmem %s5, 128
      %v878 = vld [vmem:[%s877] sm:$0xff]
      %v879 = vld [vmem:[%s877 + $0x8] sm:$0xff]
      %v880 = vld [vmem:[%s877 + $0x10] sm:$0xff]
      %v881 = vld [vmem:[%s877 + $0x18] sm:$0xff]
      %v882 = vld [vmem:[%s877 + $0x20] sm:$0xff]
      %v883 = vld [vmem:[%s877 + $0x28] sm:$0xff]
      %v884 = vld [vmem:[%s877 + $0x30] sm:$0xff]
      %v885 = vld [vmem:[%s877 + $0x38] sm:$0xff]
      %v886 = vld [vmem:[%s877 + $0x40] sm:$0xff]
      %v887 = vld [vmem:[%s877 + $0x48] sm:$0xff]
      %v888 = vld [vmem:[%s877 + $0x50] sm:$0xff]
      %v889 = vld [vmem:[%s877 + $0x58] sm:$0xff]
      %v890 = vld [vmem:[%s877 + $0x60] sm:$0xff]
      %v891 = vld [vmem:[%s877 + $0x68] sm:$0xff]
      %v892 = vld [vmem:[%s877 + $0x70] sm:$0xff]
      %v893 = vld [vmem:[%s877 + $0x78] sm:$0xff]
      %s894 = scalar_lea.vmem %s5, 256
      %v895 = vld [vmem:[%s894] sm:$0xff]
      %v896 = vld [vmem:[%s894 + $0x8] sm:$0xff]
      %v897 = vld [vmem:[%s894 + $0x10] sm:$0xff]
      %v898 = vld [vmem:[%s894 + $0x18] sm:$0xff]
      %v899 = vld [vmem:[%s894 + $0x20] sm:$0xff]
      %v900 = vld [vmem:[%s894 + $0x28] sm:$0xff]
      %v901 = vld [vmem:[%s894 + $0x30] sm:$0xff]
      %v902 = vld [vmem:[%s894 + $0x38] sm:$0xff]
      %v903 = vld [vmem:[%s894 + $0x40] sm:$0xff]
      %v904 = vld [vmem:[%s894 + $0x48] sm:$0xff]
      %v905 = vld [vmem:[%s894 + $0x50] sm:$0xff]
      %v906 = vld [vmem:[%s894 + $0x58] sm:$0xff]
      %v907 = vld [vmem:[%s894 + $0x60] sm:$0xff]
      %v908 = vld [vmem:[%s894 + $0x68] sm:$0xff]
      %v909 = vld [vmem:[%s894 + $0x70] sm:$0xff]
      %v910 = vld [vmem:[%s894 + $0x78] sm:$0xff]
      %911 = vmatprep.subr.mxu0 0.0
      %912 = vmatpush1.msra.mxu0 %v895
      %913 = vmatprep.subr.mxu0 0.0
      %914 = vmatpush1.msra.mxu0 %v896
      %915 = vmatprep.subr.mxu0 0.0
      %916 = vmatpush1.msra.mxu0 %v897
      %917 = vmatprep.subr.mxu0 0.0
      %918 = vmatpush1.msra.mxu0 %v898
      %919 = vmatprep.subr.mxu0 0.0
      %920 = vmatpush1.msra.mxu0 %v899
      %921 = vmatprep.subr.mxu0 0.0
      %922 = vmatpush1.msra.mxu0 %v900
      %923 = vmatprep.subr.mxu0 0.0
      %924 = vmatpush1.msra.mxu0 %v901
      %925 = vmatprep.subr.mxu0 0.0
      %926 = vmatpush1.msra.mxu0 %v902
      %927 = vmatprep.subr.mxu0 0.0
      %928 = vmatpush1.msra.mxu0 %v903
      %929 = vmatprep.subr.mxu0 0.0
      %930 = vmatpush1.msra.mxu0 %v904
      %931 = vmatprep.subr.mxu0 0.0
      %932 = vmatpush1.msra.mxu0 %v905
      %933 = vmatprep.subr.mxu0 0.0
      %934 = vmatpush1.msra.mxu0 %v906
      %935 = vmatprep.subr.mxu0 0.0
      %936 = vmatpush1.msra.mxu0 %v907
      %937 = vmatprep.subr.mxu0 0.0
      %938 = vmatpush1.msra.mxu0 %v908
      %939 = vmatprep.subr.mxu0 0.0
      %940 = vmatpush1.msra.mxu0 %v909
      %941 = vmatprep.subr.mxu0 0.0
      %942 = vmatpush1.msra.mxu0 %v910
      %943 = vmatprep.subr.mxu0 0.0
      %944 = vmatpush1.msra.mxu0 0.0
      %945 = vmatprep.subr.mxu0 0.0
      %946 = vmatpush1.msra.mxu0 0.0
      %947 = vmatprep.subr.mxu0 0.0
      %948 = vmatpush1.msra.mxu0 0.0
      %949 = vmatprep.subr.mxu0 0.0
      %950 = vmatpush1.msra.mxu0 0.0
      %951 = vmatprep.subr.mxu0 0.0
      %952 = vmatpush1.msra.mxu0 0.0
      %953 = vmatprep.subr.mxu0 0.0
      %954 = vmatpush1.msra.mxu0 0.0
      %955 = vmatprep.subr.mxu0 0.0
      %956 = vmatpush1.msra.mxu0 0.0
      %957 = vmatprep.subr.mxu0 0.0
      %958 = vmatpush1.msra.mxu0 0.0
      %959 = vmatprep.subr.mxu0 0.0
      %960 = vmatpush1.msra.mxu0 0.0
      %961 = vmatprep.subr.mxu0 0.0
      %962 = vmatpush1.msra.mxu0 0.0
      %963 = vmatprep.subr.mxu0 0.0
      %964 = vmatpush1.msra.mxu0 0.0
      %965 = vmatprep.subr.mxu0 0.0
      %966 = vmatpush1.msra.mxu0 0.0
      %967 = vmatprep.subr.mxu0 0.0
      %968 = vmatpush1.msra.mxu0 0.0
      %969 = vmatprep.subr.mxu0 0.0
      %970 = vmatpush1.msra.mxu0 0.0
      %971 = vmatprep.subr.mxu0 0.0
      %972 = vmatpush1.msra.mxu0 0.0
      %973 = vmatprep.subr.mxu0 0.0
      %974 = vmatpush1.msra.mxu0 0.0
      %975 = vmatprep.mubr.f32.mxu0 0.0
      %976 = vmatmul.mubr.f32.gmra.mrb[0].mxu0 %v776
      %v977 = vpop.f32.mrb[0].mxu0
      %v978 = vadd.f32 0.0, %v977
      %v979 = vpop.f32.mrb[0].mxu0
      %980 = vmatprep.mubr.f32.mxu0 0.0
      %981 = vmatmul.mubr.f32.gmra.mrb[0].mxu0 %v777
      %v982 = vpop.f32.mrb[0].mxu0
      %v983 = vadd.f32 0.0, %v982
      %v984 = vpop.f32.mrb[0].mxu0
      %985 = vdwg.mxu0
      %986 = vmatprep.subr.mxu0 0.0
      %987 = vmatpush1.msra.mxu0 %v869
      %988 = vmatprep.subr.mxu0 0.0
      %989 = vmatpush1.msra.mxu0 %v874
      %990 = vmatprep.subr.mxu0 0.0
      %991 = vmatpush1.msra.mxu0 0.0
      %992 = vmatprep.subr.mxu0 0.0
      %993 = vmatpush1.msra.mxu0 0.0
      %994 = vmatprep.subr.mxu0 0.0
      %995 = vmatpush1.msra.mxu0 0.0
      %996 = vmatprep.subr.mxu0 0.0
      %997 = vmatpush1.msra.mxu0 0.0
      %998 = vmatprep.subr.mxu0 0.0
      %999 = vmatpush1.msra.mxu0 0.0
      %1000 = vmatprep.subr.mxu0 0.0
      %1001 = vmatpush1.msra.mxu0 0.0
      %1002 = vmatprep.subr.mxu0 0.0
      %1003 = vmatpush1.msra.mxu0 0.0
      %1004 = vmatprep.subr.mxu0 0.0
      %1005 = vmatpush1.msra.mxu0 0.0
      %1006 = vmatprep.subr.mxu0 0.0
      %1007 = vmatpush1.msra.mxu0 0.0
      %1008 = vmatprep.subr.mxu0 0.0
      %1009 = vmatpush1.msra.mxu0 0.0
      %1010 = vmatprep.subr.mxu0 0.0
      %1011 = vmatpush1.msra.mxu0 0.0
      %1012 = vmatprep.subr.mxu0 0.0
      %1013 = vmatpush1.msra.mxu0 0.0
      %1014 = vmatprep.subr.mxu0 0.0
      %1015 = vmatpush1.msra.mxu0 0.0
      %1016 = vmatprep.subr.mxu0 0.0
      %1017 = vmatpush1.msra.mxu0 0.0
      %1018 = vmatprep.subr.mxu0 0.0
      %1019 = vmatpush1.msra.mxu0 0.0
      %1020 = vmatprep.subr.mxu0 0.0
      %1021 = vmatpush1.msra.mxu0 0.0
      %1022 = vmatprep.subr.mxu0 0.0
      %1023 = vmatpush1.msra.mxu0 0.0
      %1024 = vmatprep.subr.mxu0 0.0
      %1025 = vmatpush1.msra.mxu0 0.0
      %1026 = vmatprep.subr.mxu0 0.0
      %1027 = vmatpush1.msra.mxu0 0.0
      %1028 = vmatprep.subr.mxu0 0.0
      %1029 = vmatpush1.msra.mxu0 0.0
      %1030 = vmatprep.subr.mxu0 0.0
      %1031 = vmatpush1.msra.mxu0 0.0
      %1032 = vmatprep.subr.mxu0 0.0
      %1033 = vmatpush1.msra.mxu0 0.0
      %1034 = vmatprep.subr.mxu0 0.0
      %1035 = vmatpush1.msra.mxu0 0.0
      %1036 = vmatprep.subr.mxu0 0.0
      %1037 = vmatpush1.msra.mxu0 0.0
      %1038 = vmatprep.subr.mxu0 0.0
      %1039 = vmatpush1.msra.mxu0 0.0
      %1040 = vmatprep.subr.mxu0 0.0
      %1041 = vmatpush1.msra.mxu0 0.0
      %1042 = vmatprep.subr.mxu0 0.0
      %1043 = vmatpush1.msra.mxu0 0.0
      %1044 = vmatprep.subr.mxu0 0.0
      %1045 = vmatpush1.msra.mxu0 0.0
      %1046 = vmatprep.subr.mxu0 0.0
      %1047 = vmatpush1.msra.mxu0 0.0
      %1048 = vmatprep.subr.mxu0 0.0
      %1049 = vmatpush1.msra.mxu0 0.0
      %1050 = vmatprep.mubr.f32.mxu0 0.0
      %1051 = vmatmul.mubr.f32.gmra.mrb[0].mxu0 %v525
      %v1052 = vpop.f32.mrb[0].mxu0
      %v1053 = vadd.f32 0.0, %v1052
      %v1054 = vpop.f32.mrb[0].mxu0
      %1055 = vmatprep.mubr.f32.mxu0 0.0
      %1056 = vmatmul.mubr.f32.gmra.mrb[0].mxu0 %v528
      %v1057 = vpop.f32.mrb[0].mxu0
      %v1058 = vadd.f32 0.0, %v1057
      %v1059 = vpop.f32.mrb[0].mxu0
      %1060 = vdwg.mxu0
      %1061 = vmatprep.subr.mxu0 0.0
      %1062 = vmatpush1.msra.mxu0 %v878
      %1063 = vmatprep.subr.mxu0 0.0
      %1064 = vmatpush1.msra.mxu0 %v879
      %1065 = vmatprep.subr.mxu0 0.0
      %1066 = vmatpush1.msra.mxu0 %v880
      %1067 = vmatprep.subr.mxu0 0.0
      %1068 = vmatpush1.msra.mxu0 %v881
      %1069 = vmatprep.subr.mxu0 0.0
      %1070 = vmatpush1.msra.mxu0 %v882
      %1071 = vmatprep.subr.mxu0 0.0
      %1072 = vmatpush1.msra.mxu0 %v883
      %1073 = vmatprep.subr.mxu0 0.0
      %1074 = vmatpush1.msra.mxu0 %v884
      %1075 = vmatprep.subr.mxu0 0.0
      %1076 = vmatpush1.msra.mxu0 %v885
      %1077 = vmatprep.subr.mxu0 0.0
      %1078 = vmatpush1.msra.mxu0 %v886
      %1079 = vmatprep.subr.mxu0 0.0
      %1080 = vmatpush1.msra.mxu0 %v887
      %1081 = vmatprep.subr.mxu0 0.0
      %1082 = vmatpush1.msra.mxu0 %v888
      %1083 = vmatprep.subr.mxu0 0.0
      %1084 = vmatpush1.msra.mxu0 %v889
      %1085 = vmatprep.subr.mxu0 0.0
      %1086 = vmatpush1.msra.mxu0 %v890
      %1087 = vmatprep.subr.mxu0 0.0
      %1088 = vmatpush1.msra.mxu0 %v891
      %1089 = vmatprep.subr.mxu0 0.0
      %1090 = vmatpush1.msra.mxu0 %v892
      %1091 = vmatprep.subr.mxu0 0.0
      %1092 = vmatpush1.msra.mxu0 %v893
      %1093 = vmatprep.subr.mxu0 0.0
      %1094 = vmatpush1.msra.mxu0 0.0
      %1095 = vmatprep.subr.mxu0 0.0
      %1096 = vmatpush1.msra.mxu0 0.0
      %1097 = vmatprep.subr.mxu0 0.0
      %1098 = vmatpush1.msra.mxu0 0.0
      %1099 = vmatprep.subr.mxu0 0.0
      %1100 = vmatpush1.msra.mxu0 0.0
      %1101 = vmatprep.subr.mxu0 0.0
      %1102 = vmatpush1.msra.mxu0 0.0
      %1103 = vmatprep.subr.mxu0 0.0
      %1104 = vmatpush1.msra.mxu0 0.0
      %1105 = vmatprep.subr.mxu0 0.0
      %1106 = vmatpush1.msra.mxu0 0.0
      %1107 = vmatprep.subr.mxu0 0.0
      %1108 = vmatpush1.msra.mxu0 0.0
      %1109 = vmatprep.subr.mxu0 0.0
      %1110 = vmatpush1.msra.mxu0 0.0
      %1111 = vmatprep.subr.mxu0 0.0
      %1112 = vmatpush1.msra.mxu0 0.0
      %1113 = vmatprep.subr.mxu0 0.0
      %1114 = vmatpush1.msra.mxu0 0.0
      %1115 = vmatprep.subr.mxu0 0.0
      %1116 = vmatpush1.msra.mxu0 0.0
      %1117 = vmatprep.subr.mxu0 0.0
      %1118 = vmatpush1.msra.mxu0 0.0
      %1119 = vmatprep.subr.mxu0 0.0
      %1120 = vmatpush1.msra.mxu0 0.0
      %1121 = vmatprep.subr.mxu0 0.0
      %1122 = vmatpush1.msra.mxu0 0.0
      %1123 = vmatprep.subr.mxu0 0.0
      %1124 = vmatpush1.msra.mxu0 0.0
      %1125 = vmatprep.mubr.f32.mxu0 0.0
      %1126 = vmatmul.mubr.f32.gmra.mrb[0].mxu0 %v776
      %v1127 = vpop.f32.mrb[0].mxu0
      %v1128 = vadd.f32 %v1053, %v1127
      %v1129 = vpop.f32.mrb[0].mxu0
      %1130 = vmatprep.mubr.f32.mxu0 0.0
      %1131 = vmatmul.mubr.f32.gmra.mrb[0].mxu0 %v777
      %v1132 = vpop.f32.mrb[0].mxu0
      %v1133 = vadd.f32 %v1058, %v1132
      %v1134 = vpop.f32.mrb[0].mxu0
      %1135 = vdwg.mxu0
      %1136 = vmatprep.subr.mxu0 0.0
      %1137 = vmatpush1.msra.mxu0 %v978
      %1138 = vmatprep.subr.mxu0 0.0
      %1139 = vmatpush1.msra.mxu0 %v983
      %1140 = vmatprep.subr.mxu0 0.0
      %1141 = vmatpush1.msra.mxu0 0.0
      %1142 = vmatprep.subr.mxu0 0.0
      %1143 = vmatpush1.msra.mxu0 0.0
      %1144 = vmatprep.subr.mxu0 0.0
      %1145 = vmatpush1.msra.mxu0 0.0
      %1146 = vmatprep.subr.mxu0 0.0
      %1147 = vmatpush1.msra.mxu0 0.0
      %1148 = vmatprep.subr.mxu0 0.0
      %1149 = vmatpush1.msra.mxu0 0.0
      %1150 = vmatprep.subr.mxu0 0.0
      %1151 = vmatpush1.msra.mxu0 0.0
      %1152 = vmatprep.subr.mxu0 0.0
      %1153 = vmatpush1.msra.mxu0 0.0
      %1154 = vmatprep.subr.mxu0 0.0
      %1155 = vmatpush1.msra.mxu0 0.0
      %1156 = vmatprep.subr.mxu0 0.0
      %1157 = vmatpush1.msra.mxu0 0.0
      %1158 = vmatprep.subr.mxu0 0.0
      %1159 = vmatpush1.msra.mxu0 0.0
      %1160 = vmatprep.subr.mxu0 0.0
      %1161 = vmatpush1.msra.mxu0 0.0
      %1162 = vmatprep.subr.mxu0 0.0
      %1163 = vmatpush1.msra.mxu0 0.0
      %1164 = vmatprep.subr.mxu0 0.0
      %1165 = vmatpush1.msra.mxu0 0.0
      %1166 = vmatprep.subr.mxu0 0.0
      %1167 = vmatpush1.msra.mxu0 0.0
      %1168 = vmatprep.subr.mxu0 0.0
      %1169 = vmatpush1.msra.mxu0 0.0
      %1170 = vmatprep.subr.mxu0 0.0
      %1171 = vmatpush1.msra.mxu0 0.0
      %1172 = vmatprep.subr.mxu0 0.0
      %1173 = vmatpush1.msra.mxu0 0.0
      %1174 = vmatprep.subr.mxu0 0.0
      %1175 = vmatpush1.msra.mxu0 0.0
      %1176 = vmatprep.subr.mxu0 0.0
      %1177 = vmatpush1.msra.mxu0 0.0
      %1178 = vmatprep.subr.mxu0 0.0
      %1179 = vmatpush1.msra.mxu0 0.0
      %1180 = vmatprep.subr.mxu0 0.0
      %1181 = vmatpush1.msra.mxu0 0.0
      %1182 = vmatprep.subr.mxu0 0.0
      %1183 = vmatpush1.msra.mxu0 0.0
      %1184 = vmatprep.subr.mxu0 0.0
      %1185 = vmatpush1.msra.mxu0 0.0
      %1186 = vmatprep.subr.mxu0 0.0
      %1187 = vmatpush1.msra.mxu0 0.0
      %1188 = vmatprep.subr.mxu0 0.0
      %1189 = vmatpush1.msra.mxu0 0.0
      %1190 = vmatprep.subr.mxu0 0.0
      %1191 = vmatpush1.msra.mxu0 0.0
      %1192 = vmatprep.subr.mxu0 0.0
      %1193 = vmatpush1.msra.mxu0 0.0
      %1194 = vmatprep.subr.mxu0 0.0
      %1195 = vmatpush1.msra.mxu0 0.0
      %1196 = vmatprep.subr.mxu0 0.0
      %1197 = vmatpush1.msra.mxu0 0.0
      %1198 = vmatprep.subr.mxu0 0.0
      %1199 = vmatpush1.msra.mxu0 0.0
      %1200 = vmatprep.mubr.f32.mxu0 0.0
      %1201 = vmatmul.mubr.f32.gmra.mrb[0].mxu0 %v681
      %v1202 = vpop.f32.mrb[0].mxu0
      %v1203 = vadd.f32 0.0, %v1202
      %v1204 = vpop.f32.mrb[0].mxu0
      %1205 = vmatprep.mubr.f32.mxu0 0.0
      %1206 = vmatmul.mubr.f32.gmra.mrb[0].mxu0 %v684
      %v1207 = vpop.f32.mrb[0].mxu0
      %v1208 = vadd.f32 0.0, %v1207
      %v1209 = vpop.f32.mrb[0].mxu0
      %1210 = vdwg.mxu0
      %v1211 = vadd.f32 %v1128, %v1203
      %v1212 = vadd.f32 %v1133, %v1208
      %1213 = vmatprep.subr.mxu0 0.0
      %1214 = vmatpush1.msra.mxu0 %v778
      %1215 = vmatprep.subr.mxu0 0.0
      %1216 = vmatpush1.msra.mxu0 %v779
      %1217 = vmatprep.subr.mxu0 0.0
      %1218 = vmatpush1.msra.mxu0 %v780
      %1219 = vmatprep.subr.mxu0 0.0
      %1220 = vmatpush1.msra.mxu0 %v781
      %1221 = vmatprep.subr.mxu0 0.0
      %1222 = vmatpush1.msra.mxu0 %v782
      %1223 = vmatprep.subr.mxu0 0.0
      %1224 = vmatpush1.msra.mxu0 %v783
      %1225 = vmatprep.subr.mxu0 0.0
      %1226 = vmatpush1.msra.mxu0 %v784
      %1227 = vmatprep.subr.mxu0 0.0
      %1228 = vmatpush1.msra.mxu0 %v785
      %1229 = vmatprep.subr.mxu0 0.0
      %1230 = vmatpush1.msra.mxu0 0.0
      %1231 = vmatprep.subr.mxu0 0.0
      %1232 = vmatpush1.msra.mxu0 0.0
      %1233 = vmatprep.subr.mxu0 0.0
      %1234 = vmatpush1.msra.mxu0 0.0
      %1235 = vmatprep.subr.mxu0 0.0
      %1236 = vmatpush1.msra.mxu0 0.0
      %1237 = vmatprep.subr.mxu0 0.0
      %1238 = vmatpush1.msra.mxu0 0.0
      %1239 = vmatprep.subr.mxu0 0.0
      %1240 = vmatpush1.msra.mxu0 0.0
      %1241 = vmatprep.subr.mxu0 0.0
      %1242 = vmatpush1.msra.mxu0 0.0
      %1243 = vmatprep.subr.mxu0 0.0
      %1244 = vmatpush1.msra.mxu0 0.0
      %1245 = vmatprep.subr.mxu0 0.0
      %1246 = vmatpush1.msra.mxu0 0.0
      %1247 = vmatprep.subr.mxu0 0.0
      %1248 = vmatpush1.msra.mxu0 0.0
      %1249 = vmatprep.subr.mxu0 0.0
      %1250 = vmatpush1.msra.mxu0 0.0
      %1251 = vmatprep.subr.mxu0 0.0
      %1252 = vmatpush1.msra.mxu0 0.0
      %1253 = vmatprep.subr.mxu0 0.0
      %1254 = vmatpush1.msra.mxu0 0.0
      %1255 = vmatprep.subr.mxu0 0.0
      %1256 = vmatpush1.msra.mxu0 0.0
      %1257 = vmatprep.subr.mxu0 0.0
      %1258 = vmatpush1.msra.mxu0 0.0
      %1259 = vmatprep.subr.mxu0 0.0
      %1260 = vmatpush1.msra.mxu0 0.0
      %1261 = vmatprep.subr.mxu0 0.0
      %1262 = vmatpush1.msra.mxu0 0.0
      %1263 = vmatprep.subr.mxu0 0.0
      %1264 = vmatpush1.msra.mxu0 0.0
      %1265 = vmatprep.subr.mxu0 0.0
      %1266 = vmatpush1.msra.mxu0 0.0
      %1267 = vmatprep.subr.mxu0 0.0
      %1268 = vmatpush1.msra.mxu0 0.0
      %1269 = vmatprep.subr.mxu0 0.0
      %1270 = vmatpush1.msra.mxu0 0.0
      %1271 = vmatprep.subr.mxu0 0.0
      %1272 = vmatpush1.msra.mxu0 0.0
      %1273 = vmatprep.subr.mxu0 0.0
      %1274 = vmatpush1.msra.mxu0 0.0
      %1275 = vmatprep.subr.mxu0 0.0
      %1276 = vmatpush1.msra.mxu0 0.0
      %1277 = vmatprep.mubr.f32.mxu0 0.0
      %1278 = vmatmul.mubr.f32.gmra.mrb[0].mxu0 %v350
      %v1279 = vpop.f32.mrb[0].mxu0
      %v1280 = vadd.f32 %v1211, %v1279
      %v1281 = vpop.f32.mrb[0].mxu0
      %1282 = vmatprep.mubr.f32.mxu0 0.0
      %1283 = vmatmul.mubr.f32.gmra.mrb[0].mxu0 %v353
      %v1284 = vpop.f32.mrb[0].mxu0
      %v1285 = vadd.f32 %v1212, %v1284
      %v1286 = vpop.f32.mrb[0].mxu0
      %1287 = vdwg.mxu0
      %1288 = vst [vmem:[%s307] sm:$0xff] %v1280
      %1289 = vst [vmem:[%s307 + $0x8] sm:$0xff] %v1285
      %s1290 = smul.u32 2, %s19
      %p1291 = scmp.lt.s32.totalorder %s1290, 3
      %s1292 = scalar_select %p1291, %s1290, 3
      %s1293 = smul.addr %s1292, 8
      %s1294 = scalar_lea.vmem %s8, %s1293
      // Predicated region
      $region53: #{basic_block_forward.1} parent=51 // pred_check
        %p1295 = pneg %p210
      $region54: #{basic_block_forward.1} parent=51 // pred_check_branch
        %1297 = sbr.rel (%p1295) target = $region56
      $region55: #{basic_block_forward.1} parent=51 // pred_region
        %s1298 = smul.u32 2, %s19
      $region56: #{basic_block_forward.1} parent=51 // pred_fallthru
        _
    $region52: #{basic_block_forward.1} parent=5 // pred_fallthru
      _
    %p1299 = scmp.le.s32.totalorder 2, %s14
    // Predicated region
    $region57: #{basic_block_forward.1} parent=5 // pred_check
      %p1300 = pneg %p1299
    $region58: #{basic_block_forward.1} parent=5 // pred_check_branch
      %1302 = sbr.rel (%p1300) target = $region60
    $region59: #{basic_block_forward.1} parent=5 // pred_region
      %s1303 = ssub.s32 %s14, 2
      // Predicated region
      $region61: #{basic_block_forward.1} parent=59 // pred_check
        %p1304 = pneg %p216
      $region62: #{basic_block_forward.1} parent=59 // pred_check_branch
        %1306 = sbr.rel (%p1304) target = $region64
      $region63: #{basic_block_forward.1} parent=59 // pred_region
        %s1307 = smul.u32 2, %s20
        %p1308 = scmp.lt.s32.totalorder %s1307, 3
        %s1309 = scalar_select %p1308, %s1307, 3
        %s1310 = smul.addr %s1309, 8
        %s1311 = scalar_lea.vmem %s8, %s1310
      $region64: #{basic_block_forward.1} parent=59 // pred_fallthru
        _
    $region60: #{basic_block_forward.1} parent=5 // pred_fallthru
      _
  $region6: #{basic_block_forward.1} parent=0 // loop_footer
    %s18 = sadd.s32 1, %s14
  $region7: #{basic_block_forward.1} parent=0 // loop_footer_branch
    %13 = sbr.rel target = $region3
  $region8: #{basic_block_forward.1} parent=0 // loop_exit
    _

</llo_original>
